<compile_context>
chip_gen: v6e
topology: v6e:2x2x1
jax: 0.10.0
libtpu: 0.0.40
codegen_flags: <defaults>
</compile_context>

<pallas_src>
import functools

import jax
import jax.numpy as jnp
from jax import lax
from jax.experimental import pallas as pl
from jax.experimental.pallas import tpu as pltpu

PAIR_EPS = 1e-6                          # F.pairwise_distance default eps (added to the diff)
LANE = 128
VMEM_BUDGET_BYTES = 24 * 1024 * 1024     # budget for tiles + temps (see per_row_bytes below)
VMEM_LIMIT_BYTES = 40 * 1024 * 1024      # <= ~48 MiB so it also fits v7x's 64 MiB/TC VMEM
N_CORE_SPLITS = 2                        # engage both v7x TensorCores; harmless on v5e/v6e


def _round_up(x, m):
    return (x + m - 1) // m * m


def _contrastive_loss_kernel(x1_ref, x2_ref, lbl_ref, out_ref, *, n_rows, margin):
    """x1_ref/x2_ref: (TB, D) batch tile; lbl_ref: (1, TB) lane-dense labels;
    out_ref: (1, 1, 1) per-core partial sum (resident across the reduction axis)."""
    c = pl.program_id(0)                 # TensorCore split ("parallel")
    j = pl.program_id(1)                 # batch tiles of this core ("arbitrary"/reduction)
    bpc = pl.num_programs(1)
    tb = x1_ref.shape[0]

    @pl.when(j == 0)
    def _():
        out_ref[...] = jnp.zeros_like(out_ref)

    # Upcast after the (possibly bf16) DMA so HBM traffic stays in the input dtype.
    x1 = x1_ref[...].astype(jnp.float32)
    x2 = x2_ref[...].astype(jnp.float32)
    d = x1 - x2 + PAIR_EPS               # (TB, D)  VPU elementwise
    dsq = d * d

    # Per-row sum of squares, produced directly in lane-dense (1, TB) layout by contracting
    # D on the MXU (same q @ k^T contraction pattern as flash attention):
    #   ones(8, D) . dsq(TB, D)^T -> (8, TB); all 8 rows identical, keep row 0.
    ones = jnp.ones((8, dsq.shape[1]), jnp.float32)
    d2_rows = lax.dot_general(
        ones, dsq, (((1,), (1,)), ((), ())),
        preferred_element_type=jnp.float32,
        precision=lax.Precision.HIGHEST)                 # full-f32-accurate MXU passes
    d2 = d2_rows[0:1, :]                                 # (1, TB) == dist^2 per row

    lbl = lbl_ref[...].astype(jnp.float32)               # (1, TB)
    dist = jnp.sqrt(d2)                                  # EUP
    hinge = jnp.maximum(margin - dist, 0.0)
    per_row = (1.0 - lbl) * d2 + lbl * (hinge * hinge)   # (1, TB) fully lane-dense chain

    # Mask rows past the true batch size: covers the ragged last tile and the clamped
    # overhang tiles of the 2-core split (garbage can't leak through the select).
    base = (c * bpc + j) * tb
    rows = base + lax.broadcasted_iota(jnp.int32, (1, tb), 1)
    per_row = jnp.where(rows < n_rows, per_row, 0.0)

    psum = jnp.sum(per_row, axis=1, keepdims=True)       # (1, 1) lane reduce (XLU)
    out_ref[...] += psum[None]                           # accumulate per-core partial


def contrastive_loss(output1, output2, label, margin=2.0):
    """output1/output2: (N, D) in f32 or bf16; label: (N,) or (N, 1). Returns f32 loss."""
    output1 = jnp.asarray(output1)
    output2 = jnp.asarray(output2)
    label = jnp.asarray(label)
    if not jnp.issubdtype(label.dtype, jnp.floating):
        label = label.astype(jnp.float32)

    if output1.ndim == 1:                 # match F.pairwise_distance on 1-D inputs
        output1 = output1[None, :]
        output2 = output2[None, :]
    n, d = output1.shape
    label_row = label.reshape(1, n)       # lane-dense label layout (free, tiny reshape)

    # ---- tile sizing: largest 128-multiple of rows whose VMEM footprint fits the budget.
    d_pad = _round_up(d, LANE)            # lane padding of a (TB, D) tile when D < 128
    x_isz = jnp.dtype(output1.dtype).itemsize
    l_isz = jnp.dtype(label_row.dtype).itemsize
    per_row_bytes = (4 * d_pad * x_isz    # 2 inputs x 2 pipeline buffers (input dtype)
                     + 3 * d_pad * 4      # f32 elementwise temps (casts, d, d*d)
                     + 2 * 8 * l_isz)     # 2 label buffers (8-sublane padded, lane-dense)
    tb = (VMEM_BUDGET_BYTES // per_row_bytes) // LANE * LANE
    tb = max(LANE, min(tb, _round_up(n, LANE)))
    # TODO(synk): for extremely large D (>~8K) a D-tiled two-level reduction would be
    # needed to keep even a 128-row tile inside VMEM; not required for this module.

    nblocks = (n + tb - 1) // tb
    bpc = (nblocks + N_CORE_SPLITS - 1) // N_CORE_SPLITS   # batch tiles per core
    grid = (N_CORE_SPLITS, bpc)

    # Clamp overhang tile indices so no DMA ever addresses a fully out-of-range block;
    # the in-kernel logical-row mask zeroes their contribution.
    def x_map(c, j):
        return (jnp.minimum(c * bpc + j, nblocks - 1), 0)

    def lbl_map(c, j):
        return (0, jnp.minimum(c * bpc + j, nblocks - 1))

    kernel = functools.partial(_contrastive_loss_kernel, n_rows=n, margin=float(margin))

    partials = pl.pallas_call(
        kernel,
        out_shape=jax.ShapeDtypeStruct((N_CORE_SPLITS, 1, 1), jnp.float32),
        grid_spec=pltpu.PrefetchScalarGridSpec(
            num_scalar_prefetch=0,
            grid=grid,
            in_specs=[
                pl.BlockSpec((tb, d), x_map),
                pl.BlockSpec((tb, d), x_map),
                pl.BlockSpec((1, tb), lbl_map),
            ],
            out_specs=pl.BlockSpec((1, 1, 1), lambda c, j: (c, 0, 0)),
        ),
        compiler_params=pltpu.CompilerParams(
            dimension_semantics=("parallel", "arbitrary"),
            vmem_limit_bytes=VMEM_LIMIT_BYTES,
        ),
    )(output1, output2, label_row)

    return jnp.sum(partials) / n           # combine the per-core partials; mean over N


def reference(output1, output2, label, margin=2.0):
    """Pure-JAX reference of the PyTorch forward pass."""
    diff = output1.astype(jnp.float32) - output2.astype(jnp.float32) + PAIR_EPS
    dist = jnp.sqrt(jnp.sum(diff * diff, axis=-1))
    loss = (1.0 - label) * dist ** 2 + label * jnp.maximum(margin - dist, 0.0) ** 2
    return jnp.mean(loss)


if __name__ == "__main__":
    key = jax.random.PRNGKey(0)
    k1, k2, k3 = jax.random.split(key, 3)

    N, D = 250, 32                       # ragged N exercises masking + the 2-way core split
    out1 = jax.random.normal(k1, (N, D), dtype=jnp.float32)
    out2 = jax.random.normal(k2, (N, D), dtype=jnp.float32)
    label = jax.random.bernoulli(k3, 0.5, (N,)).astype(jnp.float32)

    loss = contrastive_loss(out1, out2, label, margin=2.0)
    loss = jax.block_until_ready(loss)

    ref = jax.block_until_ready(reference(out1, out2, label, margin=2.0))

    if not jnp.allclose(loss, ref, rtol=1e-4, atol=1e-5):
        raise AssertionError(f"mismatch: kernel={float(loss)} ref={float(ref)}")
    print("KERNEL_OK")
</pallas_src>

<mosaic_0001>
module attributes {stable_mosaic.version = 11 : i64} {
  func.func @_contrastive_loss_kernel(%arg0: i32, %arg1: i32, %arg2: memref<256x32xf32, #tpu.memory_space<vmem>>, %arg3: memref<256x32xf32, #tpu.memory_space<vmem>>, %arg4: memref<1x256xf32, #tpu.memory_space<vmem>>, %arg5: memref<1x1x1xf32, #tpu.memory_space<vmem>>) attributes {dimension_semantics = [#tpu.dimension_semantics<parallel>, #tpu.dimension_semantics<arbitrary>], iteration_bounds = array<i64: 2, 1>, scalar_prefetch = 0 : i64, scratch_operands = 0 : i64, tpu.core_type = #tpu.core_type<tc>, window_params = [{transform_indices = @transform_0, window_bounds = array<i64: 256, 32>}, {transform_indices = @transform_1, window_bounds = array<i64: 256, 32>}, {transform_indices = @transform_2, window_bounds = array<i64: 1, 256>}, {transform_indices = @transform_3, window_bounds = array<i64: 1, 1, 1>}]} {
    %c0_i32 = arith.constant 0 : i32
    %0 = arith.cmpi eq, %arg1, %c0_i32 : i32
    %1 = arith.extui %0 : i1 to i32
    %c0_i32_0 = arith.constant 0 : i32
    %2 = arith.cmpi ne, %1, %c0_i32_0 : i32
    scf.if %2 {
      %cst_19 = arith.constant 0.000000e+00 : f32
      %40 = vector.broadcast %cst_19 : f32 to vector<1x1x1xf32>
      %c0_20 = arith.constant 0 : index
      %c0_21 = arith.constant 0 : index
      %c0_22 = arith.constant 0 : index
      %41 = vector.load %arg5[%c0_20, %c0_21, %c0_22] : memref<1x1x1xf32, #tpu.memory_space<vmem>>, vector<1x1x1xf32>
      tpu.vector_store %arg5[%c0_20, %c0_21, %c0_22], %40 {strides = array<i32>} : memref<1x1x1xf32, #tpu.memory_space<vmem>>, vector<1x1x1xf32>,
    } else {
    }
    %c0 = arith.constant 0 : index
    %c0_1 = arith.constant 0 : index
    %3 = vector.load %arg2[%c0, %c0_1] : memref<256x32xf32, #tpu.memory_space<vmem>>, vector<256x32xf32>
    %c0_2 = arith.constant 0 : index
    %c0_3 = arith.constant 0 : index
    %4 = vector.load %arg3[%c0_2, %c0_3] : memref<256x32xf32, #tpu.memory_space<vmem>>, vector<256x32xf32>
    %5 = arith.subf %3, %4 : vector<256x32xf32>
    %cst = arith.constant 9.99999997E-7 : f32
    %6 = vector.broadcast %cst : f32 to vector<256x32xf32>
    %7 = arith.addf %5, %6 : vector<256x32xf32>
    %8 = arith.mulf %7, %7 : vector<256x32xf32>
    %cst_4 = arith.constant 1.000000e+00 : f32
    %9 = vector.broadcast %cst_4 : f32 to vector<8x32xf32>
    %cst_5 = arith.constant dense<0.000000e+00> : vector<8x256xf32>
    %10 = tpu.matmul %9, %8, %cst_5 {dimension_numbers = #tpu.dot_dimension_numbers<[1], [1], [0], [0], [0, 0, 1, 0], [], []>, precision = #tpu.contract_precision<fp32>} : vector<8x32xf32>, vector<256x32xf32>, vector<8x256xf32> -> vector<8x256xf32>
    %11 = vector.extract_strided_slice %10 {offsets = [0, 0], sizes = [1, 256], strides = [1, 1]} : vector<8x256xf32> to vector<1x256xf32>
    %c0_6 = arith.constant 0 : index
    %c0_7 = arith.constant 0 : index
    %12 = vector.load %arg4[%c0_6, %c0_7] : memref<1x256xf32, #tpu.memory_space<vmem>>, vector<1x256xf32>
    %13 = math.sqrt %11 : vector<1x256xf32>
    %cst_8 = arith.constant 2.000000e+00 : f32
    %14 = vector.broadcast %cst_8 : f32 to vector<1x256xf32>
    %15 = arith.subf %14, %13 : vector<1x256xf32>
    %cst_9 = arith.constant 0.000000e+00 : f32
    %16 = vector.broadcast %cst_9 : f32 to vector<1x256xf32>
    %17 = arith.maximumf %15, %16 : vector<1x256xf32>
    %cst_10 = arith.constant 1.000000e+00 : f32
    %18 = vector.broadcast %cst_10 : f32 to vector<1x256xf32>
    %19 = arith.subf %18, %12 : vector<1x256xf32>
    %20 = arith.mulf %19, %11 : vector<1x256xf32>
    %21 = arith.mulf %17, %17 : vector<1x256xf32>
    %22 = arith.mulf %12, %21 : vector<1x256xf32>
    %23 = arith.addf %20, %22 : vector<1x256xf32>
    %c1_i32 = arith.constant 1 : i32
    %24 = arith.muli %arg0, %c1_i32 : i32
    %25 = arith.addi %24, %arg1 : i32
    %c256_i32 = arith.constant 256 : i32
    %26 = arith.muli %25, %c256_i32 : i32
    %27 = tpu.iota {dimensions = array<i32: 1>} : vector<1x256xi32>
    %28 = vector.broadcast %26 : i32 to vector<1x256xi32>
    %29 = arith.addi %28, %27 : vector<1x256xi32>
    %c250_i32 = arith.constant 250 : i32
    %30 = vector.broadcast %c250_i32 : i32 to vector<1x256xi32>
    %31 = arith.cmpi slt, %29, %30 : vector<1x256xi32>
    %cst_11 = arith.constant 0.000000e+00 : f32
    %32 = vector.broadcast %cst_11 : f32 to vector<1x256xf32>
    %33 = arith.select %31, %23, %32 : vector<1x256xi1>, vector<1x256xf32>
    %cst_12 = arith.constant dense<0.000000e+00> : vector<1xf32>
    %34 = vector.multi_reduction <add>, %33, %cst_12 [1] : vector<1x256xf32> to vector<1xf32>
    %35 = vector.shape_cast %34 : vector<1xf32> to vector<1x1xf32>
    %c0_13 = arith.constant 0 : index
    %c0_14 = arith.constant 0 : index
    %c0_15 = arith.constant 0 : index
    %36 = vector.load %arg5[%c0_13, %c0_14, %c0_15] : memref<1x1x1xf32, #tpu.memory_space<vmem>>, vector<1x1x1xf32>
    %37 = vector.shape_cast %35 : vector<1x1xf32> to vector<1x1x1xf32>
    %38 = arith.addf %36, %37 : vector<1x1x1xf32>
    %c0_16 = arith.constant 0 : index
    %c0_17 = arith.constant 0 : index
    %c0_18 = arith.constant 0 : index
    %39 = vector.load %arg5[%c0_16, %c0_17, %c0_18] : memref<1x1x1xf32, #tpu.memory_space<vmem>>, vector<1x1x1xf32>
    tpu.vector_store %arg5[%c0_16, %c0_17, %c0_18], %38 {strides = array<i32>} : memref<1x1x1xf32, #tpu.memory_space<vmem>>, vector<1x1x1xf32>,
    return
  }
  func.func @transform_0(%arg0: i32, %arg1: i32) -> (i32, i32) {
    %c1_i32 = arith.constant 1 : i32
    %0 = arith.muli %arg0, %c1_i32 : i32
    %1 = arith.addi %0, %arg1 : i32
    %c0_i32 = arith.constant 0 : i32
    %2 = arith.minsi %1, %c0_i32 : i32
    %c0_i32_0 = arith.constant 0 : i32
    %c0_i32_1 = arith.constant 0 : i32
    return %2, %c0_i32_0 : i32, i32
  }
  func.func @transform_1(%arg0: i32, %arg1: i32) -> (i32, i32) {
    %c1_i32 = arith.constant 1 : i32
    %0 = arith.muli %arg0, %c1_i32 : i32
    %1 = arith.addi %0, %arg1 : i32
    %c0_i32 = arith.constant 0 : i32
    %2 = arith.minsi %1, %c0_i32 : i32
    %c0_i32_0 = arith.constant 0 : i32
    %c0_i32_1 = arith.constant 0 : i32
    return %2, %c0_i32_0 : i32, i32
  }
  func.func @transform_2(%arg0: i32, %arg1: i32) -> (i32, i32) {
    %c1_i32 = arith.constant 1 : i32
    %0 = arith.muli %arg0, %c1_i32 : i32
    %1 = arith.addi %0, %arg1 : i32
    %c0_i32 = arith.constant 0 : i32
    %2 = arith.minsi %1, %c0_i32 : i32
    %c0_i32_0 = arith.constant 0 : i32
    %c0_i32_1 = arith.constant 0 : i32
    return %c0_i32_0, %2 : i32, i32
  }
  func.func @transform_3(%arg0: i32, %arg1: i32) -> (i32, i32, i32) {
    %c0_i32 = arith.constant 0 : i32
    %c0_i32_0 = arith.constant 0 : i32
    %c0_i32_1 = arith.constant 0 : i32
    return %arg0, %c0_i32, %c0_i32_0 : i32, i32, i32
  }
}

</mosaic_0001>

<llo_original>
// kernel: tpu_custom_call.1
$region0: #{tpu_custom_call.1}
  #allocation0 [shape = 'u32[]', space=smem, size = 0x4, offset = 0x4, fixed_abs, tag = 'smem constant byte address 0x4 - core index']
  #allocation1 [shape = 'u32[144,128]{1,0:T(1,128)}', space=vmem, size = 0x12000, scoped, tag = 'internal scratch']
  %s0 = inlined_call_operand.vmem [shape: f32[250,32], index: 0, kind: input, shape index: {}]
  %s1 = inlined_call_operand.vmem [shape: f32[250,32], index: 1, kind: input, shape index: {}]
  %s2 = inlined_call_operand.vmem [shape: f32[1,250], index: 2, kind: input, shape index: {}]
  %s3 = inlined_call_operand.vmem [shape: f32[2,1,1], index: 3, kind: output, shape index: {}]
  %s4 = sld [smem:[#allocation0]]
  $region49: #{tpu_custom_call.1} parent=0
    _
  %s6 = ssub.s32 1, %s4
  %s7 = scalar_select 0, %s6, %s4
  loop: start=0, step=1, limit=4
  $region2: #{tpu_custom_call.1} parent=0 // loop_pre_header
    _
  $region3: #{tpu_custom_call.1} parent=0 // loop_header
    %s9 = sphi 0, %s13
    %p10 = scmp.ge.s32.totalorder %s9, 4
    %s16 = sphi 0, %s28
    %s17 = sphi 0, %s24
    %s18 = sphi 0, %s16
    %s19 = sphi 0, %s17
    %s20 = sphi 0, %s18
    %s21 = sphi 0, %s19
    %s37 = sphi 0, %s39
    %s40 = sphi 0, %s37
    %s41 = sphi 0, %s40
    %s57 = sphi 0, %s41
    %s69 = sphi 0, %s71
    %s72 = sphi 0, %s69
    %s73 = sphi 0, %s72
    %s89 = sphi 0, %s73
    %s101 = sphi 0, %s103
    %s104 = sphi 0, %s101
    %s105 = sphi 0, %s104
    %s121 = sphi 0, %s105
    %s127 = sphi 0, %s129
    %s130 = sphi 0, %s127
    %s131 = sphi 0, %s130
    %s147 = sphi 0, %s131
  $region4: #{tpu_custom_call.1} parent=0 // loop_header_branch
    %12 = sbr.rel (%p10) target = $region8
  $region5: #{tpu_custom_call.1} parent=0 // loop_body
    %s14 = ssub.s32 %s9, 1
    %s15 = ssub.s32 %s9, 2
    %s22 = sadd.s32 1, %s17
    %p23 = scmp.ge.s32.totalorder %s22, 1
    %s24 = scalar_select %p23, 0, %s22
    %s25 = sadd.s32 1, %s16
    %s26 = scalar_select %p23, %s25, %s16
    %p27 = scmp.ge.s32.totalorder %s26, 2
    %s28 = scalar_select %p27, 0, %s26
    %s29 = sadd.s32 %s16, %s17
    %p30 = scmp.lt.s32.totalorder %s29, 0
    %s31 = scalar_select %p30, %s29, 0
    %s32 = sadd.s32 %s28, %s24
    %p33 = scmp.lt.s32.totalorder %s32, 0
    %s34 = scalar_select %p33, %s32, 0
    %s35 = ssub.s32 %s31, %s34
    %p36 = scmp.eq.s32.totalorder %s35, 0
    %s38 = sadd.s32 %s37, 1
    %s39 = scalar_select %p36, %s37, %s38
    %p42 = pneg %p36
    %p43 = scmp.eq.s32.totalorder %s9, 1
    %p44 = por %p42, %p43
    %p45 = scmp.ne.s32.totalorder %s37, %s40
    %p46 = scmp.eq.s32.totalorder %s9, 0
    %p47 = por %p45, %p46
    %p48 = scmp.ne.s32.totalorder %s37, %s40
    %p49 = scmp.eq.s32.totalorder %s14, 1
    %p50 = por %p48, %p49
    %p51 = scmp.ne.s32.totalorder %s40, %s41
    %p52 = scmp.eq.s32.totalorder %s14, 0
    %p53 = por %p51, %p52
    %p54 = scmp.ne.s32.totalorder %s40, %s41
    %p55 = scmp.eq.s32.totalorder %s15, 1
    %p56 = por %p54, %p55
    %p58 = scmp.ne.s32.totalorder %s41, %s57
    %p59 = scmp.eq.s32.totalorder %s15, 0
    %p60 = por %p58, %p59
    %s61 = sadd.s32 %s16, %s17
    %p62 = scmp.lt.s32.totalorder %s61, 0
    %s63 = scalar_select %p62, %s61, 0
    %s64 = sadd.s32 %s28, %s24
    %p65 = scmp.lt.s32.totalorder %s64, 0
    %s66 = scalar_select %p65, %s64, 0
    %s67 = ssub.s32 %s63, %s66
    %p68 = scmp.eq.s32.totalorder %s67, 0
    %s70 = sadd.s32 %s69, 1
    %s71 = scalar_select %p68, %s69, %s70
    %p74 = pneg %p68
    %p75 = scmp.eq.s32.totalorder %s9, 1
    %p76 = por %p74, %p75
    %p77 = scmp.ne.s32.totalorder %s69, %s72
    %p78 = scmp.eq.s32.totalorder %s9, 0
    %p79 = por %p77, %p78
    %p80 = scmp.ne.s32.totalorder %s69, %s72
    %p81 = scmp.eq.s32.totalorder %s14, 1
    %p82 = por %p80, %p81
    %p83 = scmp.ne.s32.totalorder %s72, %s73
    %p84 = scmp.eq.s32.totalorder %s14, 0
    %p85 = por %p83, %p84
    %p86 = scmp.ne.s32.totalorder %s72, %s73
    %p87 = scmp.eq.s32.totalorder %s15, 1
    %p88 = por %p86, %p87
    %p90 = scmp.ne.s32.totalorder %s73, %s89
    %p91 = scmp.eq.s32.totalorder %s15, 0
    %p92 = por %p90, %p91
    %s93 = sadd.s32 %s16, %s17
    %p94 = scmp.lt.s32.totalorder %s93, 0
    %s95 = scalar_select %p94, %s93, 0
    %s96 = sadd.s32 %s28, %s24
    %p97 = scmp.lt.s32.totalorder %s96, 0
    %s98 = scalar_select %p97, %s96, 0
    %s99 = ssub.s32 %s95, %s98
    %p100 = scmp.eq.s32.totalorder %s99, 0
    %s102 = sadd.s32 %s101, 1
    %s103 = scalar_select %p100, %s101, %s102
    %p106 = pneg %p100
    %p107 = scmp.eq.s32.totalorder %s9, 1
    %p108 = por %p106, %p107
    %p109 = scmp.ne.s32.totalorder %s101, %s104
    %p110 = scmp.eq.s32.totalorder %s9, 0
    %p111 = por %p109, %p110
    %p112 = scmp.ne.s32.totalorder %s101, %s104
    %p113 = scmp.eq.s32.totalorder %s14, 1
    %p114 = por %p112, %p113
    %p115 = scmp.ne.s32.totalorder %s104, %s105
    %p116 = scmp.eq.s32.totalorder %s14, 0
    %p117 = por %p115, %p116
    %p118 = scmp.ne.s32.totalorder %s104, %s105
    %p119 = scmp.eq.s32.totalorder %s15, 1
    %p120 = por %p118, %p119
    %p122 = scmp.ne.s32.totalorder %s105, %s121
    %p123 = scmp.eq.s32.totalorder %s15, 0
    %p124 = por %p122, %p123
    %s125 = ssub.s32 %s16, %s28
    %p126 = scmp.eq.s32.totalorder %s125, 0
    %s128 = sadd.s32 %s127, 1
    %s129 = scalar_select %p126, %s127, %s128
    %p132 = pneg %p126
    %p133 = scmp.eq.s32.totalorder %s9, 1
    %p134 = por %p132, %p133
    %p135 = scmp.ne.s32.totalorder %s127, %s130
    %p136 = scmp.eq.s32.totalorder %s9, 0
    %p137 = por %p135, %p136
    %p138 = scmp.ne.s32.totalorder %s127, %s130
    %p139 = scmp.eq.s32.totalorder %s14, 1
    %p140 = por %p138, %p139
    %p141 = scmp.ne.s32.totalorder %s130, %s131
    %p142 = scmp.eq.s32.totalorder %s14, 0
    %p143 = por %p141, %p142
    %p144 = scmp.ne.s32.totalorder %s130, %s131
    %p145 = scmp.eq.s32.totalorder %s15, 1
    %p146 = por %p144, %p145
    %p148 = scmp.ne.s32.totalorder %s131, %s147
    %p149 = scmp.eq.s32.totalorder %s15, 0
    %p150 = por %p148, %p149
    %p151 = scmp.le.s32.totalorder 1, %s9
    %p152 = scmp.lt.s32.totalorder %s9, 3
    %p153 = pnand %p151, %p152
    %p154 = pneg %p153
    // Predicated region
    $region9: #{tpu_custom_call.1} parent=5 // pred_check
      _
    $region10: #{tpu_custom_call.1} parent=5 // pred_check_branch
      %156 = sbr.rel (%p153) target = $region12
    $region11: #{tpu_custom_call.1} parent=5 // pred_region
      %s157 = ssub.s32 %s9, 1
    $region12: #{tpu_custom_call.1} parent=5 // pred_fallthru
      _
    %p158 = scmp.lt.s32.totalorder %s9, 2
    // Predicated region
    $region13: #{tpu_custom_call.1} parent=5 // pred_check
      %p159 = pneg %p158
    $region14: #{tpu_custom_call.1} parent=5 // pred_check_branch
      %161 = sbr.rel (%p159) target = $region16
    $region15: #{tpu_custom_call.1} parent=5 // pred_region
      // Predicated region
      $region17: #{tpu_custom_call.1} parent=15 // pred_check
        %p162 = pneg %p47
      $region18: #{tpu_custom_call.1} parent=15 // pred_check_branch
        %164 = sbr.rel (%p162) target = $region20
      $region19: #{tpu_custom_call.1} parent=15 // pred_region
        %s165 = sadd.s32 %s16, %s17
        %p166 = scmp.lt.s32.totalorder %s165, 0
        %s167 = scalar_select %p166, %s165, 0
        %s168 = smul.u32 32, %s167
        %p169 = scmp.lt.s32.totalorder %s168, 31
        %s170 = scalar_select %p169, %s168, 31
        %s171 = smul.addr %s170, 8
        %s172 = scalar_lea.vmem %s0, %s171
        %s173 = sadd.s32 %s16, %s17
        %p174 = scmp.lt.s32.totalorder %s173, 0
        %s175 = scalar_select %p174, %s173, 0
        %s176 = smul.u32 32, %s175
      $region20: #{tpu_custom_call.1} parent=15 // pred_fallthru
        _
      // Predicated region
      $region21: #{tpu_custom_call.1} parent=15 // pred_check
        %p177 = pneg %p79
      $region22: #{tpu_custom_call.1} parent=15 // pred_check_branch
        %179 = sbr.rel (%p177) target = $region24
      $region23: #{tpu_custom_call.1} parent=15 // pred_region
        %s180 = sadd.s32 %s16, %s17
        %p181 = scmp.lt.s32.totalorder %s180, 0
        %s182 = scalar_select %p181, %s180, 0
        %s183 = smul.u32 32, %s182
        %p184 = scmp.lt.s32.totalorder %s183, 31
        %s185 = scalar_select %p184, %s183, 31
        %s186 = smul.addr %s185, 8
        %s187 = scalar_lea.vmem %s1, %s186
        %s188 = sadd.s32 %s16, %s17
        %p189 = scmp.lt.s32.totalorder %s188, 0
        %s190 = scalar_select %p189, %s188, 0
        %s191 = smul.u32 32, %s190
      $region24: #{tpu_custom_call.1} parent=15 // pred_fallthru
        _
      // Predicated region
      $region25: #{tpu_custom_call.1} parent=15 // pred_check
        %p192 = pneg %p111
      $region26: #{tpu_custom_call.1} parent=15 // pred_check_branch
        %194 = sbr.rel (%p192) target = $region28
      $region27: #{tpu_custom_call.1} parent=15 // pred_region
        %s195 = sadd.s32 %s16, %s17
        %p196 = scmp.lt.s32.totalorder %s195, 0
        %s197 = scalar_select %p196, %s195, 0
        %s198 = smul.u32 2, %s197
        %p199 = scmp.lt.s32.totalorder %s198, 1
        %s200 = scalar_select %p199, %s198, 1
        %s201 = scalar_lea.vmem %s2, %s200
        %s202 = sadd.s32 %s16, %s17
        %p203 = scmp.lt.s32.totalorder %s202, 0
        %s204 = scalar_select %p203, %s202, 0
        %s205 = smul.u32 2, %s204
      $region28: #{tpu_custom_call.1} parent=15 // pred_fallthru
        _
    $region16: #{tpu_custom_call.1} parent=5 // pred_fallthru
      _
    %p206 = scmp.le.s32.totalorder 1, %s9
    %p207 = scmp.lt.s32.totalorder %s9, 3
    %p208 = pnand %p206, %p207
    %p209 = pneg %p208
    // Predicated region
    $region29: #{tpu_custom_call.1} parent=5 // pred_check
      _
    $region30: #{tpu_custom_call.1} parent=5 // pred_check_branch
      %211 = sbr.rel (%p208) target = $region32
    $region31: #{tpu_custom_call.1} parent=5 // pred_region
      %s212 = ssub.s32 %s9, 1
      %s213 = sadd.s32 %s18, %s19
      %p214 = scmp.lt.s32.totalorder %s213, 0
      %s215 = scalar_select %p214, %s213, 0
      %s216 = smul.u32 32, %s215
      %p217 = scmp.lt.s32.totalorder %s216, 31
      %s218 = scalar_select %p217, %s216, 31
      %s219 = smul.addr %s218, 8
      %s220 = scalar_lea.vmem %s0, %s219
      %p221 = pneg %p53
      %p222 = pneg %p50
      %s223 = sadd.s32 %s18, %s19
      %p224 = scmp.lt.s32.totalorder %s223, 0
      %s225 = scalar_select %p224, %s223, 0
      %s226 = smul.u32 32, %s225
      %p227 = scmp.lt.s32.totalorder %s226, 31
      %s228 = scalar_select %p227, %s226, 31
      %s229 = smul.addr %s228, 8
      %s230 = scalar_lea.vmem %s1, %s229
      %p231 = pneg %p85
      %p232 = pneg %p82
      %s233 = sadd.s32 %s18, %s19
      %p234 = scmp.lt.s32.totalorder %s233, 0
      %s235 = scalar_select %p234, %s233, 0
      %s236 = smul.u32 2, %s235
      %p237 = scmp.lt.s32.totalorder %s236, 1
      %s238 = scalar_select %p237, %s236, 1
      %s239 = scalar_lea.vmem %s2, %s238
      %p240 = pneg %p117
      %p241 = pneg %p114
      %p242 = pneg %p143
      %p243 = pneg %p140
      %p244 = scmp.lt.s32.totalorder %s18, 1
      %s245 = scalar_select %p244, %s18, 1
      %s246 = scalar_lea.vmem %s3, %s245
      %s247 = sadd.s32 %s18, %s19
      %p248 = scmp.lt.s32.totalorder %s247, 0
      %s249 = scalar_select %p248, %s247, 0
      %s250 = smul.u32 32, %s249
      %p251 = scmp.lt.s32.totalorder %s250, 31
      %s252 = scalar_select %p251, %s250, 31
      %s253 = smul.addr %s252, 8
      %s254 = scalar_lea.vmem %s0, %s253
      %s255 = sadd.s32 %s18, %s19
      %p256 = scmp.lt.s32.totalorder %s255, 0
      %s257 = scalar_select %p256, %s255, 0
      %s258 = smul.u32 32, %s257
      %s259 = sadd.s32 %s18, %s19
      %p260 = scmp.lt.s32.totalorder %s259, 0
      %s261 = scalar_select %p260, %s259, 0
      %s262 = smul.u32 32, %s261
      %p263 = scmp.lt.s32.totalorder %s262, 31
      %s264 = scalar_select %p263, %s262, 31
      %s265 = smul.addr %s264, 8
      %s266 = scalar_lea.vmem %s1, %s265
      %s267 = sadd.s32 %s18, %s19
      %p268 = scmp.lt.s32.totalorder %s267, 0
      %s269 = scalar_select %p268, %s267, 0
      %s270 = smul.u32 32, %s269
      %s271 = sadd.s32 %s18, %s19
      %p272 = scmp.lt.s32.totalorder %s271, 0
      %s273 = scalar_select %p272, %s271, 0
      %s274 = smul.u32 2, %s273
      %p275 = scmp.lt.s32.totalorder %s274, 1
      %s276 = scalar_select %p275, %s274, 1
      %s277 = scalar_lea.vmem %s2, %s276
      %s278 = sadd.s32 %s18, %s19
      %p279 = scmp.lt.s32.totalorder %s278, 0
      %s280 = scalar_select %p279, %s278, 0
      %s281 = smul.u32 2, %s280
      %p282 = scmp.lt.s32.totalorder %s18, 1
      %s283 = scalar_select %p282, %s18, 1
      %s284 = scalar_lea.vmem %s3, %s283
      %p285 = scmp.eq.s32.totalorder %s19, 0
      // Predicated region
      $region33: #{tpu_custom_call.1} parent=31 // pred_check
        %p286 = pneg %p285
      $region34: #{tpu_custom_call.1} parent=31 // pred_check_branch
        %288 = sbr.rel (%p286) target = $region36
      $region35: #{tpu_custom_call.1} parent=31 // pred_region
        %vm289 = vcmask 0
        %290 = vst.msk [vmem:[%s284] sm:$0x1] %vm289, 0.0
      $region36: #{tpu_custom_call.1} parent=31 // pred_fallthru
        _
      %v291 = vld [vmem:[%s254] sm:$0xff]
      %v292 = vld [vmem:[%s254 + $0x8] sm:$0xff]
      %v293 = vld [vmem:[%s254 + $0x10] sm:$0xff]
      %v294 = vld [vmem:[%s254 + $0x18] sm:$0xff]
      %v295 = vld [vmem:[%s254 + $0x20] sm:$0xff]
      %v296 = vld [vmem:[%s254 + $0x28] sm:$0xff]
      %v297 = vld [vmem:[%s254 + $0x30] sm:$0xff]
      %v298 = vld [vmem:[%s254 + $0x38] sm:$0xff]
      %v299 = vld [vmem:[%s254 + $0x40] sm:$0xff]
      %v300 = vld [vmem:[%s254 + $0x48] sm:$0xff]
      %v301 = vld [vmem:[%s254 + $0x50] sm:$0xff]
      %v302 = vld [vmem:[%s254 + $0x58] sm:$0xff]
      %v303 = vld [vmem:[%s254 + $0x60] sm:$0xff]
      %v304 = vld [vmem:[%s254 + $0x68] sm:$0xff]
      %v305 = vld [vmem:[%s254 + $0x70] sm:$0xff]
      %v306 = vld [vmem:[%s254 + $0x78] sm:$0xff]
      %v307 = vld [vmem:[%s254 + $0x80] sm:$0xff]
      %v308 = vld [vmem:[%s254 + $0x88] sm:$0xff]
      %v309 = vld [vmem:[%s254 + $0x90] sm:$0xff]
      %v310 = vld [vmem:[%s254 + $0x98] sm:$0xff]
      %v311 = vld [vmem:[%s254 + $0xa0] sm:$0xff]
      %v312 = vld [vmem:[%s254 + $0xa8] sm:$0xff]
      %v313 = vld [vmem:[%s254 + $0xb0] sm:$0xff]
      %v314 = vld [vmem:[%s254 + $0xb8] sm:$0xff]
      %v315 = vld [vmem:[%s254 + $0xc0] sm:$0xff]
      %v316 = vld [vmem:[%s254 + $0xc8] sm:$0xff]
      %v317 = vld [vmem:[%s254 + $0xd0] sm:$0xff]
      %v318 = vld [vmem:[%s254 + $0xd8] sm:$0xff]
      %v319 = vld [vmem:[%s254 + $0xe0] sm:$0xff]
      %v320 = vld [vmem:[%s254 + $0xe8] sm:$0xff]
      %v321 = vld [vmem:[%s254 + $0xf0] sm:$0xff]
      %v322 = vld [vmem:[%s254 + $0xf8] sm:$0xff]
      %v323 = vld [vmem:[%s266] sm:$0xff]
      %v324 = vld [vmem:[%s266 + $0x8] sm:$0xff]
      %v325 = vld [vmem:[%s266 + $0x10] sm:$0xff]
      %v326 = vld [vmem:[%s266 + $0x18] sm:$0xff]
      %v327 = vld [vmem:[%s266 + $0x20] sm:$0xff]
      %v328 = vld [vmem:[%s266 + $0x28] sm:$0xff]
      %v329 = vld [vmem:[%s266 + $0x30] sm:$0xff]
      %v330 = vld [vmem:[%s266 + $0x38] sm:$0xff]
      %v331 = vld [vmem:[%s266 + $0x40] sm:$0xff]
      %v332 = vld [vmem:[%s266 + $0x48] sm:$0xff]
      %v333 = vld [vmem:[%s266 + $0x50] sm:$0xff]
      %v334 = vld [vmem:[%s266 + $0x58] sm:$0xff]
      %v335 = vld [vmem:[%s266 + $0x60] sm:$0xff]
      %v336 = vld [vmem:[%s266 + $0x68] sm:$0xff]
      %v337 = vld [vmem:[%s266 + $0x70] sm:$0xff]
      %v338 = vld [vmem:[%s266 + $0x78] sm:$0xff]
      %v339 = vld [vmem:[%s266 + $0x80] sm:$0xff]
      %v340 = vld [vmem:[%s266 + $0x88] sm:$0xff]
      %v341 = vld [vmem:[%s266 + $0x90] sm:$0xff]
      %v342 = vld [vmem:[%s266 + $0x98] sm:$0xff]
      %v343 = vld [vmem:[%s266 + $0xa0] sm:$0xff]
      %v344 = vld [vmem:[%s266 + $0xa8] sm:$0xff]
      %v345 = vld [vmem:[%s266 + $0xb0] sm:$0xff]
      %v346 = vld [vmem:[%s266 + $0xb8] sm:$0xff]
      %v347 = vld [vmem:[%s266 + $0xc0] sm:$0xff]
      %v348 = vld [vmem:[%s266 + $0xc8] sm:$0xff]
      %v349 = vld [vmem:[%s266 + $0xd0] sm:$0xff]
      %v350 = vld [vmem:[%s266 + $0xd8] sm:$0xff]
      %v351 = vld [vmem:[%s266 + $0xe0] sm:$0xff]
      %v352 = vld [vmem:[%s266 + $0xe8] sm:$0xff]
      %v353 = vld [vmem:[%s266 + $0xf0] sm:$0xff]
      %v354 = vld [vmem:[%s266 + $0xf8] sm:$0xff]
      %v355 = vsub.f32 %v291, %v323
      %v356 = vsub.f32 %v292, %v324
      %v357 = vsub.f32 %v293, %v325
      %v358 = vsub.f32 %v294, %v326
      %v359 = vsub.f32 %v295, %v327
      %v360 = vsub.f32 %v296, %v328
      %v361 = vsub.f32 %v297, %v329
      %v362 = vsub.f32 %v298, %v330
      %v363 = vsub.f32 %v299, %v331
      %v364 = vsub.f32 %v300, %v332
      %v365 = vsub.f32 %v301, %v333
      %v366 = vsub.f32 %v302, %v334
      %v367 = vsub.f32 %v303, %v335
      %v368 = vsub.f32 %v304, %v336
      %v369 = vsub.f32 %v305, %v337
      %v370 = vsub.f32 %v306, %v338
      %v371 = vsub.f32 %v307, %v339
      %v372 = vsub.f32 %v308, %v340
      %v373 = vsub.f32 %v309, %v341
      %v374 = vsub.f32 %v310, %v342
      %v375 = vsub.f32 %v311, %v343
      %v376 = vsub.f32 %v312, %v344
      %v377 = vsub.f32 %v313, %v345
      %v378 = vsub.f32 %v314, %v346
      %v379 = vsub.f32 %v315, %v347
      %v380 = vsub.f32 %v316, %v348
      %v381 = vsub.f32 %v317, %v349
      %v382 = vsub.f32 %v318, %v350
      %v383 = vsub.f32 %v319, %v351
      %v384 = vsub.f32 %v320, %v352
      %v385 = vsub.f32 %v321, %v353
      %v386 = vsub.f32 %v322, %v354
      %v387 = vadd.f32 %v355, 1e-06
      %v388 = vadd.f32 %v356, 1e-06
      %v389 = vadd.f32 %v357, 1e-06
      %v390 = vadd.f32 %v358, 1e-06
      %v391 = vadd.f32 %v359, 1e-06
      %v392 = vadd.f32 %v360, 1e-06
      %v393 = vadd.f32 %v361, 1e-06
      %v394 = vadd.f32 %v362, 1e-06
      %v395 = vadd.f32 %v363, 1e-06
      %v396 = vadd.f32 %v364, 1e-06
      %v397 = vadd.f32 %v365, 1e-06
      %v398 = vadd.f32 %v366, 1e-06
      %v399 = vadd.f32 %v367, 1e-06
      %v400 = vadd.f32 %v368, 1e-06
      %v401 = vadd.f32 %v369, 1e-06
      %v402 = vadd.f32 %v370, 1e-06
      %v403 = vadd.f32 %v371, 1e-06
      %v404 = vadd.f32 %v372, 1e-06
      %v405 = vadd.f32 %v373, 1e-06
      %v406 = vadd.f32 %v374, 1e-06
      %v407 = vadd.f32 %v375, 1e-06
      %v408 = vadd.f32 %v376, 1e-06
      %v409 = vadd.f32 %v377, 1e-06
      %v410 = vadd.f32 %v378, 1e-06
      %v411 = vadd.f32 %v379, 1e-06
      %v412 = vadd.f32 %v380, 1e-06
      %v413 = vadd.f32 %v381, 1e-06
      %v414 = vadd.f32 %v382, 1e-06
      %v415 = vadd.f32 %v383, 1e-06
      %v416 = vadd.f32 %v384, 1e-06
      %v417 = vadd.f32 %v385, 1e-06
      %v418 = vadd.f32 %v386, 1e-06
      %v419 = vmul.f32 %v387, %v387
      %v420 = vmul.f32 %v388, %v388
      %v421 = vmul.f32 %v389, %v389
      %v422 = vmul.f32 %v390, %v390
      %v423 = vmul.f32 %v391, %v391
      %v424 = vmul.f32 %v392, %v392
      %v425 = vmul.f32 %v393, %v393
      %v426 = vmul.f32 %v394, %v394
      %v427 = vmul.f32 %v395, %v395
      %v428 = vmul.f32 %v396, %v396
      %v429 = vmul.f32 %v397, %v397
      %v430 = vmul.f32 %v398, %v398
      %v431 = vmul.f32 %v399, %v399
      %v432 = vmul.f32 %v400, %v400
      %v433 = vmul.f32 %v401, %v401
      %v434 = vmul.f32 %v402, %v402
      %v435 = vmul.f32 %v403, %v403
      %v436 = vmul.f32 %v404, %v404
      %v437 = vmul.f32 %v405, %v405
      %v438 = vmul.f32 %v406, %v406
      %v439 = vmul.f32 %v407, %v407
      %v440 = vmul.f32 %v408, %v408
      %v441 = vmul.f32 %v409, %v409
      %v442 = vmul.f32 %v410, %v410
      %v443 = vmul.f32 %v411, %v411
      %v444 = vmul.f32 %v412, %v412
      %v445 = vmul.f32 %v413, %v413
      %v446 = vmul.f32 %v414, %v414
      %v447 = vmul.f32 %v415, %v415
      %v448 = vmul.f32 %v416, %v416
      %v449 = vmul.f32 %v417, %v417
      %v450 = vmul.f32 %v418, %v418
      %vm451 = vcmask 261120
      %v453 = vsel %vm451, 1.0, 0
      %v456 = vsel %vm451, %v419, 0
      %v459 = vsel %vm451, %v420, 0
      %v462 = vsel %vm451, %v421, 0
      %v465 = vsel %vm451, %v422, 0
      %v468 = vsel %vm451, %v423, 0
      %v471 = vsel %vm451, %v424, 0
      %v474 = vsel %vm451, %v425, 0
      %v477 = vsel %vm451, %v426, 0
      %v480 = vsel %vm451, %v427, 0
      %v483 = vsel %vm451, %v428, 0
      %v486 = vsel %vm451, %v429, 0
      %v489 = vsel %vm451, %v430, 0
      %v492 = vsel %vm451, %v431, 0
      %v495 = vsel %vm451, %v432, 0
      %v498 = vsel %vm451, %v433, 0
      %v501 = vsel %vm451, %v434, 0
      %v504 = vsel %vm451, %v435, 0
      %v507 = vsel %vm451, %v436, 0
      %v510 = vsel %vm451, %v437, 0
      %v513 = vsel %vm451, %v438, 0
      %v516 = vsel %vm451, %v439, 0
      %v519 = vsel %vm451, %v440, 0
      %v522 = vsel %vm451, %v441, 0
      %v525 = vsel %vm451, %v442, 0
      %v528 = vsel %vm451, %v443, 0
      %v531 = vsel %vm451, %v444, 0
      %v534 = vsel %vm451, %v445, 0
      %v537 = vsel %vm451, %v446, 0
      %v540 = vsel %vm451, %v447, 0
      %v543 = vsel %vm451, %v448, 0
      %v546 = vsel %vm451, %v449, 0
      %v549 = vsel %vm451, %v450, 0
      %551 = vmatprep.subr.mxu0 0.0
      %v552 = vand.u32 %v501, 4294901760
      %553 = vmatpush1.xpose.msra.mxu0 %v552
      %554 = vmatprep.subr.mxu0 0.0
      %v555 = vand.u32 %v498, 4294901760
      %556 = vmatpush1.xpose.msra.mxu0 %v555
      %557 = vmatprep.subr.mxu0 0.0
      %v558 = vand.u32 %v495, 4294901760
      %559 = vmatpush1.xpose.msra.mxu0 %v558
      %560 = vmatprep.subr.mxu0 0.0
      %v561 = vand.u32 %v492, 4294901760
      %562 = vmatpush1.xpose.msra.mxu0 %v561
      %563 = vmatprep.subr.mxu0 0.0
      %v564 = vand.u32 %v489, 4294901760
      %565 = vmatpush1.xpose.msra.mxu0 %v564
      %566 = vmatprep.subr.mxu0 0.0
      %v567 = vand.u32 %v486, 4294901760
      %568 = vmatpush1.xpose.msra.mxu0 %v567
      %569 = vmatprep.subr.mxu0 0.0
      %v570 = vand.u32 %v483, 4294901760
      %571 = vmatpush1.xpose.msra.mxu0 %v570
      %572 = vmatprep.subr.mxu0 0.0
      %v573 = vand.u32 %v480, 4294901760
      %574 = vmatpush1.xpose.msra.mxu0 %v573
      %575 = vmatprep.subr.mxu0 0.0
      %v576 = vand.u32 %v477, 4294901760
      %577 = vmatpush1.xpose.msra.mxu0 %v576
      %578 = vmatprep.subr.mxu0 0.0
      %v579 = vand.u32 %v474, 4294901760
      %580 = vmatpush1.xpose.msra.mxu0 %v579
      %581 = vmatprep.subr.mxu0 0.0
      %v582 = vand.u32 %v471, 4294901760
      %583 = vmatpush1.xpose.msra.mxu0 %v582
      %584 = vmatprep.subr.mxu0 0.0
      %v585 = vand.u32 %v468, 4294901760
      %586 = vmatpush1.xpose.msra.mxu0 %v585
      %587 = vmatprep.subr.mxu0 0.0
      %v588 = vand.u32 %v465, 4294901760
      %589 = vmatpush1.xpose.msra.mxu0 %v588
      %590 = vmatprep.subr.mxu0 0.0
      %v591 = vand.u32 %v462, 4294901760
      %592 = vmatpush1.xpose.msra.mxu0 %v591
      %593 = vmatprep.subr.mxu0 0.0
      %v594 = vand.u32 %v459, 4294901760
      %595 = vmatpush1.xpose.msra.mxu0 %v594
      %596 = vmatprep.subr.mxu0 0.0
      %v597 = vand.u32 %v456, 4294901760
      %598 = vmatpush1.xpose.msra.mxu0 %v597
      %599 = vmatprep.subr.mxu0 0.0
      %v600 = vand.u32 %v549, 4294901760
      %601 = vmatpush2.xpose.msra.mxu0 %v600
      %602 = vmatprep.subr.mxu0 0.0
      %v603 = vand.u32 %v546, 4294901760
      %604 = vmatpush2.xpose.msra.mxu0 %v603
      %605 = vmatprep.subr.mxu0 0.0
      %v606 = vand.u32 %v543, 4294901760
      %607 = vmatpush2.xpose.msra.mxu0 %v606
      %608 = vmatprep.subr.mxu0 0.0
      %v609 = vand.u32 %v540, 4294901760
      %610 = vmatpush2.xpose.msra.mxu0 %v609
      %611 = vmatprep.subr.mxu0 0.0
      %v612 = vand.u32 %v537, 4294901760
      %613 = vmatpush2.xpose.msra.mxu0 %v612
      %614 = vmatprep.subr.mxu0 0.0
      %v615 = vand.u32 %v534, 4294901760
      %616 = vmatpush2.xpose.msra.mxu0 %v615
      %617 = vmatprep.subr.mxu0 0.0
      %v618 = vand.u32 %v531, 4294901760
      %619 = vmatpush2.xpose.msra.mxu0 %v618
      %620 = vmatprep.subr.mxu0 0.0
      %v621 = vand.u32 %v528, 4294901760
      %622 = vmatpush2.xpose.msra.mxu0 %v621
      %623 = vmatprep.subr.mxu0 0.0
      %v624 = vand.u32 %v525, 4294901760
      %625 = vmatpush2.xpose.msra.mxu0 %v624
      %626 = vmatprep.subr.mxu0 0.0
      %v627 = vand.u32 %v522, 4294901760
      %628 = vmatpush2.xpose.msra.mxu0 %v627
      %629 = vmatprep.subr.mxu0 0.0
      %v630 = vand.u32 %v519, 4294901760
      %631 = vmatpush2.xpose.msra.mxu0 %v630
      %632 = vmatprep.subr.mxu0 0.0
      %v633 = vand.u32 %v516, 4294901760
      %634 = vmatpush2.xpose.msra.mxu0 %v633
      %635 = vmatprep.subr.mxu0 0.0
      %v636 = vand.u32 %v513, 4294901760
      %637 = vmatpush2.xpose.msra.mxu0 %v636
      %638 = vmatprep.subr.mxu0 0.0
      %v639 = vand.u32 %v510, 4294901760
      %640 = vmatpush2.xpose.msra.mxu0 %v639
      %641 = vmatprep.subr.mxu0 0.0
      %v642 = vand.u32 %v507, 4294901760
      %643 = vmatpush2.xpose.msra.mxu0 %v642
      %644 = vmatprep.subr.mxu0 0.0
      %v645 = vand.u32 %v504, 4294901760
      %646 = vmatpush2.xpose.msra.mxu0 %v645
      %647 = vmatprep.mubr.f32.mxu0 0.0
      %v648 = vand.u32 %v453, 4294901760
      %v649 = vsub.f32 %v453, %v648
      %v650 = vand.u32 %v649, 4294901760
      %v651 = vsub.f32 %v649, %v650
      %v652 = vand.u32 %v651, 4294901760
      %653 = vmatmul.mubr.f32.gmra.mxu0 %v652
      %v654 = vpop.f32.mrf.mxu0
      %v655 = vadd.f32 0.0, %v654
      %v656 = vpop.f32.mrf.mxu0
      %v657 = vadd.f32 0.0, %v656
      %658 = vdwg.mxu0
      %659 = vmatprep.subr.mxu0 0.0
      %v660 = vand.u32 %v501, 4294901760
      %v661 = vsub.f32 %v501, %v660
      %v662 = vand.u32 %v661, 4294901760
      %v663 = vsub.f32 %v661, %v662
      %v664 = vand.u32 %v663, 4294901760
      %665 = vmatpush1.xpose.msra.mxu0 %v664
      %666 = vmatprep.subr.mxu0 0.0
      %v667 = vand.u32 %v498, 4294901760
      %v668 = vsub.f32 %v498, %v667
      %v669 = vand.u32 %v668, 4294901760
      %v670 = vsub.f32 %v668, %v669
      %v671 = vand.u32 %v670, 4294901760
      %672 = vmatpush1.xpose.msra.mxu0 %v671
      %673 = vmatprep.subr.mxu0 0.0
      %v674 = vand.u32 %v495, 4294901760
      %v675 = vsub.f32 %v495, %v674
      %v676 = vand.u32 %v675, 4294901760
      %v677 = vsub.f32 %v675, %v676
      %v678 = vand.u32 %v677, 4294901760
      %679 = vmatpush1.xpose.msra.mxu0 %v678
      %680 = vmatprep.subr.mxu0 0.0
      %v681 = vand.u32 %v492, 4294901760
      %v682 = vsub.f32 %v492, %v681
      %v683 = vand.u32 %v682, 4294901760
      %v684 = vsub.f32 %v682, %v683
      %v685 = vand.u32 %v684, 4294901760
      %686 = vmatpush1.xpose.msra.mxu0 %v685
      %687 = vmatprep.subr.mxu0 0.0
      %v688 = vand.u32 %v489, 4294901760
      %v689 = vsub.f32 %v489, %v688
      %v690 = vand.u32 %v689, 4294901760
      %v691 = vsub.f32 %v689, %v690
      %v692 = vand.u32 %v691, 4294901760
      %693 = vmatpush1.xpose.msra.mxu0 %v692
      %694 = vmatprep.subr.mxu0 0.0
      %v695 = vand.u32 %v486, 4294901760
      %v696 = vsub.f32 %v486, %v695
      %v697 = vand.u32 %v696, 4294901760
      %v698 = vsub.f32 %v696, %v697
      %v699 = vand.u32 %v698, 4294901760
      %700 = vmatpush1.xpose.msra.mxu0 %v699
      %701 = vmatprep.subr.mxu0 0.0
      %v702 = vand.u32 %v483, 4294901760
      %v703 = vsub.f32 %v483, %v702
      %v704 = vand.u32 %v703, 4294901760
      %v705 = vsub.f32 %v703, %v704
      %v706 = vand.u32 %v705, 4294901760
      %707 = vmatpush1.xpose.msra.mxu0 %v706
      %708 = vmatprep.subr.mxu0 0.0
      %v709 = vand.u32 %v480, 4294901760
      %v710 = vsub.f32 %v480, %v709
      %v711 = vand.u32 %v710, 4294901760
      %v712 = vsub.f32 %v710, %v711
      %v713 = vand.u32 %v712, 4294901760
      %714 = vmatpush1.xpose.msra.mxu0 %v713
      %715 = vmatprep.subr.mxu0 0.0
      %v716 = vand.u32 %v477, 4294901760
      %v717 = vsub.f32 %v477, %v716
      %v718 = vand.u32 %v717, 4294901760
      %v719 = vsub.f32 %v717, %v718
      %v720 = vand.u32 %v719, 4294901760
      %721 = vmatpush1.xpose.msra.mxu0 %v720
      %722 = vmatprep.subr.mxu0 0.0
      %v723 = vand.u32 %v474, 4294901760
      %v724 = vsub.f32 %v474, %v723
      %v725 = vand.u32 %v724, 4294901760
      %v726 = vsub.f32 %v724, %v725
      %v727 = vand.u32 %v726, 4294901760
      %728 = vmatpush1.xpose.msra.mxu0 %v727
      %729 = vmatprep.subr.mxu0 0.0
      %v730 = vand.u32 %v471, 4294901760
      %v731 = vsub.f32 %v471, %v730
      %v732 = vand.u32 %v731, 4294901760
      %v733 = vsub.f32 %v731, %v732
      %v734 = vand.u32 %v733, 4294901760
      %735 = vmatpush1.xpose.msra.mxu0 %v734
      %736 = vmatprep.subr.mxu0 0.0
      %v737 = vand.u32 %v468, 4294901760
      %v738 = vsub.f32 %v468, %v737
      %v739 = vand.u32 %v738, 4294901760
      %v740 = vsub.f32 %v738, %v739
      %v741 = vand.u32 %v740, 4294901760
      %742 = vmatpush1.xpose.msra.mxu0 %v741
      %743 = vmatprep.subr.mxu0 0.0
      %v744 = vand.u32 %v465, 4294901760
      %v745 = vsub.f32 %v465, %v744
      %v746 = vand.u32 %v745, 4294901760
      %v747 = vsub.f32 %v745, %v746
      %v748 = vand.u32 %v747, 4294901760
      %749 = vmatpush1.xpose.msra.mxu0 %v748
      %750 = vmatprep.subr.mxu0 0.0
      %v751 = vand.u32 %v462, 4294901760
      %v752 = vsub.f32 %v462, %v751
      %v753 = vand.u32 %v752, 4294901760
      %v754 = vsub.f32 %v752, %v753
      %v755 = vand.u32 %v754, 4294901760
      %756 = vmatpush1.xpose.msra.mxu0 %v755
      %757 = vmatprep.subr.mxu0 0.0
      %v758 = vand.u32 %v459, 4294901760
      %v759 = vsub.f32 %v459, %v758
      %v760 = vand.u32 %v759, 4294901760
      %v761 = vsub.f32 %v759, %v760
      %v762 = vand.u32 %v761, 4294901760
      %763 = vmatpush1.xpose.msra.mxu0 %v762
      %764 = vmatprep.subr.mxu0 0.0
      %v765 = vand.u32 %v456, 4294901760
      %v766 = vsub.f32 %v456, %v765
      %v767 = vand.u32 %v766, 4294901760
      %v768 = vsub.f32 %v766, %v767
      %v769 = vand.u32 %v768, 4294901760
      %770 = vmatpush1.xpose.msra.mxu0 %v769
      %771 = vmatprep.subr.mxu0 0.0
      %v772 = vand.u32 %v549, 4294901760
      %v773 = vsub.f32 %v549, %v772
      %v774 = vand.u32 %v773, 4294901760
      %v775 = vsub.f32 %v773, %v774
      %v776 = vand.u32 %v775, 4294901760
      %777 = vmatpush2.xpose.msra.mxu0 %v776
      %778 = vmatprep.subr.mxu0 0.0
      %v779 = vand.u32 %v546, 4294901760
      %v780 = vsub.f32 %v546, %v779
      %v781 = vand.u32 %v780, 4294901760
      %v782 = vsub.f32 %v780, %v781
      %v783 = vand.u32 %v782, 4294901760
      %784 = vmatpush2.xpose.msra.mxu0 %v783
      %785 = vmatprep.subr.mxu0 0.0
      %v786 = vand.u32 %v543, 4294901760
      %v787 = vsub.f32 %v543, %v786
      %v788 = vand.u32 %v787, 4294901760
      %v789 = vsub.f32 %v787, %v788
      %v790 = vand.u32 %v789, 4294901760
      %791 = vmatpush2.xpose.msra.mxu0 %v790
      %792 = vmatprep.subr.mxu0 0.0
      %v793 = vand.u32 %v540, 4294901760
      %v794 = vsub.f32 %v540, %v793
      %v795 = vand.u32 %v794, 4294901760
      %v796 = vsub.f32 %v794, %v795
      %v797 = vand.u32 %v796, 4294901760
      %798 = vmatpush2.xpose.msra.mxu0 %v797
      %799 = vmatprep.subr.mxu0 0.0
      %v800 = vand.u32 %v537, 4294901760
      %v801 = vsub.f32 %v537, %v800
      %v802 = vand.u32 %v801, 4294901760
      %v803 = vsub.f32 %v801, %v802
      %v804 = vand.u32 %v803, 4294901760
      %805 = vmatpush2.xpose.msra.mxu0 %v804
      %806 = vmatprep.subr.mxu0 0.0
      %v807 = vand.u32 %v534, 4294901760
      %v808 = vsub.f32 %v534, %v807
      %v809 = vand.u32 %v808, 4294901760
      %v810 = vsub.f32 %v808, %v809
      %v811 = vand.u32 %v810, 4294901760
      %812 = vmatpush2.xpose.msra.mxu0 %v811
      %813 = vmatprep.subr.mxu0 0.0
      %v814 = vand.u32 %v531, 4294901760
      %v815 = vsub.f32 %v531, %v814
      %v816 = vand.u32 %v815, 4294901760
      %v817 = vsub.f32 %v815, %v816
      %v818 = vand.u32 %v817, 4294901760
      %819 = vmatpush2.xpose.msra.mxu0 %v818
      %820 = vmatprep.subr.mxu0 0.0
      %v821 = vand.u32 %v528, 4294901760
      %v822 = vsub.f32 %v528, %v821
      %v823 = vand.u32 %v822, 4294901760
      %v824 = vsub.f32 %v822, %v823
      %v825 = vand.u32 %v824, 4294901760
      %826 = vmatpush2.xpose.msra.mxu0 %v825
      %827 = vmatprep.subr.mxu0 0.0
      %v828 = vand.u32 %v525, 4294901760
      %v829 = vsub.f32 %v525, %v828
      %v830 = vand.u32 %v829, 4294901760
      %v831 = vsub.f32 %v829, %v830
      %v832 = vand.u32 %v831, 4294901760
      %833 = vmatpush2.xpose.msra.mxu0 %v832
      %834 = vmatprep.subr.mxu0 0.0
      %v835 = vand.u32 %v522, 4294901760
      %v836 = vsub.f32 %v522, %v835
      %v837 = vand.u32 %v836, 4294901760
      %v838 = vsub.f32 %v836, %v837
      %v839 = vand.u32 %v838, 4294901760
      %840 = vmatpush2.xpose.msra.mxu0 %v839
      %841 = vmatprep.subr.mxu0 0.0
      %v842 = vand.u32 %v519, 4294901760
      %v843 = vsub.f32 %v519, %v842
      %v844 = vand.u32 %v843, 4294901760
      %v845 = vsub.f32 %v843, %v844
      %v846 = vand.u32 %v845, 4294901760
      %847 = vmatpush2.xpose.msra.mxu0 %v846
      %848 = vmatprep.subr.mxu0 0.0
      %v849 = vand.u32 %v516, 4294901760
      %v850 = vsub.f32 %v516, %v849
      %v851 = vand.u32 %v850, 4294901760
      %v852 = vsub.f32 %v850, %v851
      %v853 = vand.u32 %v852, 4294901760
      %854 = vmatpush2.xpose.msra.mxu0 %v853
      %855 = vmatprep.subr.mxu0 0.0
      %v856 = vand.u32 %v513, 4294901760
      %v857 = vsub.f32 %v513, %v856
      %v858 = vand.u32 %v857, 4294901760
      %v859 = vsub.f32 %v857, %v858
      %v860 = vand.u32 %v859, 4294901760
      %861 = vmatpush2.xpose.msra.mxu0 %v860
      %862 = vmatprep.subr.mxu0 0.0
      %v863 = vand.u32 %v510, 4294901760
      %v864 = vsub.f32 %v510, %v863
      %v865 = vand.u32 %v864, 4294901760
      %v866 = vsub.f32 %v864, %v865
      %v867 = vand.u32 %v866, 4294901760
      %868 = vmatpush2.xpose.msra.mxu0 %v867
      %869 = vmatprep.subr.mxu0 0.0
      %v870 = vand.u32 %v507, 4294901760
      %v871 = vsub.f32 %v507, %v870
      %v872 = vand.u32 %v871, 4294901760
      %v873 = vsub.f32 %v871, %v872
      %v874 = vand.u32 %v873, 4294901760
      %875 = vmatpush2.xpose.msra.mxu0 %v874
      %876 = vmatprep.subr.mxu0 0.0
      %v877 = vand.u32 %v504, 4294901760
      %v878 = vsub.f32 %v504, %v877
      %v879 = vand.u32 %v878, 4294901760
      %v880 = vsub.f32 %v878, %v879
      %v881 = vand.u32 %v880, 4294901760
      %882 = vmatpush2.xpose.msra.mxu0 %v881
      %883 = vmatprep.mubr.f32.mxu0 0.0
      %v884 = vand.u32 %v453, 4294901760
      %885 = vmatmul.mubr.f32.gmra.mxu0 %v884
      %v886 = vpop.f32.mrf.mxu0
      %v887 = vadd.f32 %v655, %v886
      %v888 = vpop.f32.mrf.mxu0
      %v889 = vadd.f32 %v657, %v888
      %890 = vdwg.mxu0
      %891 = vmatprep.subr.mxu0 0.0
      %v892 = vand.u32 %v501, 4294901760
      %v893 = vsub.f32 %v501, %v892
      %894 = vmatpush1.xpose.msra.mxu0 %v893
      %895 = vmatprep.subr.mxu0 0.0
      %v896 = vand.u32 %v498, 4294901760
      %v897 = vsub.f32 %v498, %v896
      %898 = vmatpush1.xpose.msra.mxu0 %v897
      %899 = vmatprep.subr.mxu0 0.0
      %v900 = vand.u32 %v495, 4294901760
      %v901 = vsub.f32 %v495, %v900
      %902 = vmatpush1.xpose.msra.mxu0 %v901
      %903 = vmatprep.subr.mxu0 0.0
      %v904 = vand.u32 %v492, 4294901760
      %v905 = vsub.f32 %v492, %v904
      %906 = vmatpush1.xpose.msra.mxu0 %v905
      %907 = vmatprep.subr.mxu0 0.0
      %v908 = vand.u32 %v489, 4294901760
      %v909 = vsub.f32 %v489, %v908
      %910 = vmatpush1.xpose.msra.mxu0 %v909
      %911 = vmatprep.subr.mxu0 0.0
      %v912 = vand.u32 %v486, 4294901760
      %v913 = vsub.f32 %v486, %v912
      %914 = vmatpush1.xpose.msra.mxu0 %v913
      %915 = vmatprep.subr.mxu0 0.0
      %v916 = vand.u32 %v483, 4294901760
      %v917 = vsub.f32 %v483, %v916
      %918 = vmatpush1.xpose.msra.mxu0 %v917
      %919 = vmatprep.subr.mxu0 0.0
      %v920 = vand.u32 %v480, 4294901760
      %v921 = vsub.f32 %v480, %v920
      %922 = vmatpush1.xpose.msra.mxu0 %v921
      %923 = vmatprep.subr.mxu0 0.0
      %v924 = vand.u32 %v477, 4294901760
      %v925 = vsub.f32 %v477, %v924
      %926 = vmatpush1.xpose.msra.mxu0 %v925
      %927 = vmatprep.subr.mxu0 0.0
      %v928 = vand.u32 %v474, 4294901760
      %v929 = vsub.f32 %v474, %v928
      %930 = vmatpush1.xpose.msra.mxu0 %v929
      %931 = vmatprep.subr.mxu0 0.0
      %v932 = vand.u32 %v471, 4294901760
      %v933 = vsub.f32 %v471, %v932
      %934 = vmatpush1.xpose.msra.mxu0 %v933
      %935 = vmatprep.subr.mxu0 0.0
      %v936 = vand.u32 %v468, 4294901760
      %v937 = vsub.f32 %v468, %v936
      %938 = vmatpush1.xpose.msra.mxu0 %v937
      %939 = vmatprep.subr.mxu0 0.0
      %v940 = vand.u32 %v465, 4294901760
      %v941 = vsub.f32 %v465, %v940
      %942 = vmatpush1.xpose.msra.mxu0 %v941
      %943 = vmatprep.subr.mxu0 0.0
      %v944 = vand.u32 %v462, 4294901760
      %v945 = vsub.f32 %v462, %v944
      %946 = vmatpush1.xpose.msra.mxu0 %v945
      %947 = vmatprep.subr.mxu0 0.0
      %v948 = vand.u32 %v459, 4294901760
      %v949 = vsub.f32 %v459, %v948
      %950 = vmatpush1.xpose.msra.mxu0 %v949
      %951 = vmatprep.subr.mxu0 0.0
      %v952 = vand.u32 %v456, 4294901760
      %v953 = vsub.f32 %v456, %v952
      %954 = vmatpush1.xpose.msra.mxu0 %v953
      %955 = vmatprep.subr.mxu0 0.0
      %v956 = vand.u32 %v549, 4294901760
      %v957 = vsub.f32 %v549, %v956
      %958 = vmatpush2.xpose.msra.mxu0 %v957
      %959 = vmatprep.subr.mxu0 0.0
      %v960 = vand.u32 %v546, 4294901760
      %v961 = vsub.f32 %v546, %v960
      %962 = vmatpush2.xpose.msra.mxu0 %v961
      %963 = vmatprep.subr.mxu0 0.0
      %v964 = vand.u32 %v543, 4294901760
      %v965 = vsub.f32 %v543, %v964
      %966 = vmatpush2.xpose.msra.mxu0 %v965
      %967 = vmatprep.subr.mxu0 0.0
      %v968 = vand.u32 %v540, 4294901760
      %v969 = vsub.f32 %v540, %v968
      %970 = vmatpush2.xpose.msra.mxu0 %v969
      %971 = vmatprep.subr.mxu0 0.0
      %v972 = vand.u32 %v537, 4294901760
      %v973 = vsub.f32 %v537, %v972
      %974 = vmatpush2.xpose.msra.mxu0 %v973
      %975 = vmatprep.subr.mxu0 0.0
      %v976 = vand.u32 %v534, 4294901760
      %v977 = vsub.f32 %v534, %v976
      %978 = vmatpush2.xpose.msra.mxu0 %v977
      %979 = vmatprep.subr.mxu0 0.0
      %v980 = vand.u32 %v531, 4294901760
      %v981 = vsub.f32 %v531, %v980
      %982 = vmatpush2.xpose.msra.mxu0 %v981
      %983 = vmatprep.subr.mxu0 0.0
      %v984 = vand.u32 %v528, 4294901760
      %v985 = vsub.f32 %v528, %v984
      %986 = vmatpush2.xpose.msra.mxu0 %v985
      %987 = vmatprep.subr.mxu0 0.0
      %v988 = vand.u32 %v525, 4294901760
      %v989 = vsub.f32 %v525, %v988
      %990 = vmatpush2.xpose.msra.mxu0 %v989
      %991 = vmatprep.subr.mxu0 0.0
      %v992 = vand.u32 %v522, 4294901760
      %v993 = vsub.f32 %v522, %v992
      %994 = vmatpush2.xpose.msra.mxu0 %v993
      %995 = vmatprep.subr.mxu0 0.0
      %v996 = vand.u32 %v519, 4294901760
      %v997 = vsub.f32 %v519, %v996
      %998 = vmatpush2.xpose.msra.mxu0 %v997
      %999 = vmatprep.subr.mxu0 0.0
      %v1000 = vand.u32 %v516, 4294901760
      %v1001 = vsub.f32 %v516, %v1000
      %1002 = vmatpush2.xpose.msra.mxu0 %v1001
      %1003 = vmatprep.subr.mxu0 0.0
      %v1004 = vand.u32 %v513, 4294901760
      %v1005 = vsub.f32 %v513, %v1004
      %1006 = vmatpush2.xpose.msra.mxu0 %v1005
      %1007 = vmatprep.subr.mxu0 0.0
      %v1008 = vand.u32 %v510, 4294901760
      %v1009 = vsub.f32 %v510, %v1008
      %1010 = vmatpush2.xpose.msra.mxu0 %v1009
      %1011 = vmatprep.subr.mxu0 0.0
      %v1012 = vand.u32 %v507, 4294901760
      %v1013 = vsub.f32 %v507, %v1012
      %1014 = vmatpush2.xpose.msra.mxu0 %v1013
      %1015 = vmatprep.subr.mxu0 0.0
      %v1016 = vand.u32 %v504, 4294901760
      %v1017 = vsub.f32 %v504, %v1016
      %1018 = vmatpush2.xpose.msra.mxu0 %v1017
      %1019 = vmatprep.mubr.f32.mxu0 0.0
      %v1020 = vand.u32 %v453, 4294901760
      %v1021 = vsub.f32 %v453, %v1020
      %1022 = vmatmul.mubr.f32.gmra.mxu0 %v1021
      %v1023 = vpop.f32.mrf.mxu0
      %v1024 = vadd.f32 %v887, %v1023
      %v1025 = vpop.f32.mrf.mxu0
      %v1026 = vadd.f32 %v889, %v1025
      %1027 = vdwg.mxu0
      %1028 = vmatprep.subr.mxu0 0.0
      %v1029 = vand.u32 %v501, 4294901760
      %1030 = vmatpush1.xpose.msra.mxu0 %v1029
      %1031 = vmatprep.subr.mxu0 0.0
      %v1032 = vand.u32 %v498, 4294901760
      %1033 = vmatpush1.xpose.msra.mxu0 %v1032
      %1034 = vmatprep.subr.mxu0 0.0
      %v1035 = vand.u32 %v495, 4294901760
      %1036 = vmatpush1.xpose.msra.mxu0 %v1035
      %1037 = vmatprep.subr.mxu0 0.0
      %v1038 = vand.u32 %v492, 4294901760
      %1039 = vmatpush1.xpose.msra.mxu0 %v1038
      %1040 = vmatprep.subr.mxu0 0.0
      %v1041 = vand.u32 %v489, 4294901760
      %1042 = vmatpush1.xpose.msra.mxu0 %v1041
      %1043 = vmatprep.subr.mxu0 0.0
      %v1044 = vand.u32 %v486, 4294901760
      %1045 = vmatpush1.xpose.msra.mxu0 %v1044
      %1046 = vmatprep.subr.mxu0 0.0
      %v1047 = vand.u32 %v483, 4294901760
      %1048 = vmatpush1.xpose.msra.mxu0 %v1047
      %1049 = vmatprep.subr.mxu0 0.0
      %v1050 = vand.u32 %v480, 4294901760
      %1051 = vmatpush1.xpose.msra.mxu0 %v1050
      %1052 = vmatprep.subr.mxu0 0.0
      %v1053 = vand.u32 %v477, 4294901760
      %1054 = vmatpush1.xpose.msra.mxu0 %v1053
      %1055 = vmatprep.subr.mxu0 0.0
      %v1056 = vand.u32 %v474, 4294901760
      %1057 = vmatpush1.xpose.msra.mxu0 %v1056
      %1058 = vmatprep.subr.mxu0 0.0
      %v1059 = vand.u32 %v471, 4294901760
      %1060 = vmatpush1.xpose.msra.mxu0 %v1059
      %1061 = vmatprep.subr.mxu0 0.0
      %v1062 = vand.u32 %v468, 4294901760
      %1063 = vmatpush1.xpose.msra.mxu0 %v1062
      %1064 = vmatprep.subr.mxu0 0.0
      %v1065 = vand.u32 %v465, 4294901760
      %1066 = vmatpush1.xpose.msra.mxu0 %v1065
      %1067 = vmatprep.subr.mxu0 0.0
      %v1068 = vand.u32 %v462, 4294901760
      %1069 = vmatpush1.xpose.msra.mxu0 %v1068
      %1070 = vmatprep.subr.mxu0 0.0
      %v1071 = vand.u32 %v459, 4294901760
      %1072 = vmatpush1.xpose.msra.mxu0 %v1071
      %1073 = vmatprep.subr.mxu0 0.0
      %v1074 = vand.u32 %v456, 4294901760
      %1075 = vmatpush1.xpose.msra.mxu0 %v1074
      %1076 = vmatprep.subr.mxu0 0.0
      %v1077 = vand.u32 %v549, 4294901760
      %1078 = vmatpush2.xpose.msra.mxu0 %v1077
      %1079 = vmatprep.subr.mxu0 0.0
      %v1080 = vand.u32 %v546, 4294901760
      %1081 = vmatpush2.xpose.msra.mxu0 %v1080
      %1082 = vmatprep.subr.mxu0 0.0
      %v1083 = vand.u32 %v543, 4294901760
      %1084 = vmatpush2.xpose.msra.mxu0 %v1083
      %1085 = vmatprep.subr.mxu0 0.0
      %v1086 = vand.u32 %v540, 4294901760
      %1087 = vmatpush2.xpose.msra.mxu0 %v1086
      %1088 = vmatprep.subr.mxu0 0.0
      %v1089 = vand.u32 %v537, 4294901760
      %1090 = vmatpush2.xpose.msra.mxu0 %v1089
      %1091 = vmatprep.subr.mxu0 0.0
      %v1092 = vand.u32 %v534, 4294901760
      %1093 = vmatpush2.xpose.msra.mxu0 %v1092
      %1094 = vmatprep.subr.mxu0 0.0
      %v1095 = vand.u32 %v531, 4294901760
      %1096 = vmatpush2.xpose.msra.mxu0 %v1095
      %1097 = vmatprep.subr.mxu0 0.0
      %v1098 = vand.u32 %v528, 4294901760
      %1099 = vmatpush2.xpose.msra.mxu0 %v1098
      %1100 = vmatprep.subr.mxu0 0.0
      %v1101 = vand.u32 %v525, 4294901760
      %1102 = vmatpush2.xpose.msra.mxu0 %v1101
      %1103 = vmatprep.subr.mxu0 0.0
      %v1104 = vand.u32 %v522, 4294901760
      %1105 = vmatpush2.xpose.msra.mxu0 %v1104
      %1106 = vmatprep.subr.mxu0 0.0
      %v1107 = vand.u32 %v519, 4294901760
      %1108 = vmatpush2.xpose.msra.mxu0 %v1107
      %1109 = vmatprep.subr.mxu0 0.0
      %v1110 = vand.u32 %v516, 4294901760
      %1111 = vmatpush2.xpose.msra.mxu0 %v1110
      %1112 = vmatprep.subr.mxu0 0.0
      %v1113 = vand.u32 %v513, 4294901760
      %1114 = vmatpush2.xpose.msra.mxu0 %v1113
      %1115 = vmatprep.subr.mxu0 0.0
      %v1116 = vand.u32 %v510, 4294901760
      %1117 = vmatpush2.xpose.msra.mxu0 %v1116
      %1118 = vmatprep.subr.mxu0 0.0
      %v1119 = vand.u32 %v507, 4294901760
      %1120 = vmatpush2.xpose.msra.mxu0 %v1119
      %1121 = vmatprep.subr.mxu0 0.0
      %v1122 = vand.u32 %v504, 4294901760
      %1123 = vmatpush2.xpose.msra.mxu0 %v1122
      %1124 = vmatprep.mubr.f32.mxu0 0.0
      %v1125 = vand.u32 %v453, 4294901760
      %v1126 = vsub.f32 %v453, %v1125
      %v1127 = vand.u32 %v1126, 4294901760
      %1128 = vmatmul.mubr.f32.gmra.mxu0 %v1127
      %v1129 = vpop.f32.mrf.mxu0
      %v1130 = vadd.f32 %v1024, %v1129
      %v1131 = vpop.f32.mrf.mxu0
      %v1132 = vadd.f32 %v1026, %v1131
      %1133 = vdwg.mxu0
      %1134 = vmatprep.subr.mxu0 0.0
      %v1135 = vand.u32 %v501, 4294901760
      %v1136 = vsub.f32 %v501, %v1135
      %v1137 = vand.u32 %v1136, 4294901760
      %1138 = vmatpush1.xpose.msra.mxu0 %v1137
      %1139 = vmatprep.subr.mxu0 0.0
      %v1140 = vand.u32 %v498, 4294901760
      %v1141 = vsub.f32 %v498, %v1140
      %v1142 = vand.u32 %v1141, 4294901760
      %1143 = vmatpush1.xpose.msra.mxu0 %v1142
      %1144 = vmatprep.subr.mxu0 0.0
      %v1145 = vand.u32 %v495, 4294901760
      %v1146 = vsub.f32 %v495, %v1145
      %v1147 = vand.u32 %v1146, 4294901760
      %1148 = vmatpush1.xpose.msra.mxu0 %v1147
      %1149 = vmatprep.subr.mxu0 0.0
      %v1150 = vand.u32 %v492, 4294901760
      %v1151 = vsub.f32 %v492, %v1150
      %v1152 = vand.u32 %v1151, 4294901760
      %1153 = vmatpush1.xpose.msra.mxu0 %v1152
      %1154 = vmatprep.subr.mxu0 0.0
      %v1155 = vand.u32 %v489, 4294901760
      %v1156 = vsub.f32 %v489, %v1155
      %v1157 = vand.u32 %v1156, 4294901760
      %1158 = vmatpush1.xpose.msra.mxu0 %v1157
      %1159 = vmatprep.subr.mxu0 0.0
      %v1160 = vand.u32 %v486, 4294901760
      %v1161 = vsub.f32 %v486, %v1160
      %v1162 = vand.u32 %v1161, 4294901760
      %1163 = vmatpush1.xpose.msra.mxu0 %v1162
      %1164 = vmatprep.subr.mxu0 0.0
      %v1165 = vand.u32 %v483, 4294901760
      %v1166 = vsub.f32 %v483, %v1165
      %v1167 = vand.u32 %v1166, 4294901760
      %1168 = vmatpush1.xpose.msra.mxu0 %v1167
      %1169 = vmatprep.subr.mxu0 0.0
      %v1170 = vand.u32 %v480, 4294901760
      %v1171 = vsub.f32 %v480, %v1170
      %v1172 = vand.u32 %v1171, 4294901760
      %1173 = vmatpush1.xpose.msra.mxu0 %v1172
      %1174 = vmatprep.subr.mxu0 0.0
      %v1175 = vand.u32 %v477, 4294901760
      %v1176 = vsub.f32 %v477, %v1175
      %v1177 = vand.u32 %v1176, 4294901760
      %1178 = vmatpush1.xpose.msra.mxu0 %v1177
      %1179 = vmatprep.subr.mxu0 0.0
      %v1180 = vand.u32 %v474, 4294901760
      %v1181 = vsub.f32 %v474, %v1180
      %v1182 = vand.u32 %v1181, 4294901760
      %1183 = vmatpush1.xpose.msra.mxu0 %v1182
      %1184 = vmatprep.subr.mxu0 0.0
      %v1185 = vand.u32 %v471, 4294901760
      %v1186 = vsub.f32 %v471, %v1185
      %v1187 = vand.u32 %v1186, 4294901760
      %1188 = vmatpush1.xpose.msra.mxu0 %v1187
      %1189 = vmatprep.subr.mxu0 0.0
      %v1190 = vand.u32 %v468, 4294901760
      %v1191 = vsub.f32 %v468, %v1190
      %v1192 = vand.u32 %v1191, 4294901760
      %1193 = vmatpush1.xpose.msra.mxu0 %v1192
      %1194 = vmatprep.subr.mxu0 0.0
      %v1195 = vand.u32 %v465, 4294901760
      %v1196 = vsub.f32 %v465, %v1195
      %v1197 = vand.u32 %v1196, 4294901760
      %1198 = vmatpush1.xpose.msra.mxu0 %v1197
      %1199 = vmatprep.subr.mxu0 0.0
      %v1200 = vand.u32 %v462, 4294901760
      %v1201 = vsub.f32 %v462, %v1200
      %v1202 = vand.u32 %v1201, 4294901760
      %1203 = vmatpush1.xpose.msra.mxu0 %v1202
      %1204 = vmatprep.subr.mxu0 0.0
      %v1205 = vand.u32 %v459, 4294901760
      %v1206 = vsub.f32 %v459, %v1205
      %v1207 = vand.u32 %v1206, 4294901760
      %1208 = vmatpush1.xpose.msra.mxu0 %v1207
      %1209 = vmatprep.subr.mxu0 0.0
      %v1210 = vand.u32 %v456, 4294901760
      %v1211 = vsub.f32 %v456, %v1210
      %v1212 = vand.u32 %v1211, 4294901760
      %1213 = vmatpush1.xpose.msra.mxu0 %v1212
      %1214 = vmatprep.subr.mxu0 0.0
      %v1215 = vand.u32 %v549, 4294901760
      %v1216 = vsub.f32 %v549, %v1215
      %v1217 = vand.u32 %v1216, 4294901760
      %1218 = vmatpush2.xpose.msra.mxu0 %v1217
      %1219 = vmatprep.subr.mxu0 0.0
      %v1220 = vand.u32 %v546, 4294901760
      %v1221 = vsub.f32 %v546, %v1220
      %v1222 = vand.u32 %v1221, 4294901760
      %1223 = vmatpush2.xpose.msra.mxu0 %v1222
      %1224 = vmatprep.subr.mxu0 0.0
      %v1225 = vand.u32 %v543, 4294901760
      %v1226 = vsub.f32 %v543, %v1225
      %v1227 = vand.u32 %v1226, 4294901760
      %1228 = vmatpush2.xpose.msra.mxu0 %v1227
      %1229 = vmatprep.subr.mxu0 0.0
      %v1230 = vand.u32 %v540, 4294901760
      %v1231 = vsub.f32 %v540, %v1230
      %v1232 = vand.u32 %v1231, 4294901760
      %1233 = vmatpush2.xpose.msra.mxu0 %v1232
      %1234 = vmatprep.subr.mxu0 0.0
      %v1235 = vand.u32 %v537, 4294901760
      %v1236 = vsub.f32 %v537, %v1235
      %v1237 = vand.u32 %v1236, 4294901760
      %1238 = vmatpush2.xpose.msra.mxu0 %v1237
      %1239 = vmatprep.subr.mxu0 0.0
      %v1240 = vand.u32 %v534, 4294901760
      %v1241 = vsub.f32 %v534, %v1240
      %v1242 = vand.u32 %v1241, 4294901760
      %1243 = vmatpush2.xpose.msra.mxu0 %v1242
      %1244 = vmatprep.subr.mxu0 0.0
      %v1245 = vand.u32 %v531, 4294901760
      %v1246 = vsub.f32 %v531, %v1245
      %v1247 = vand.u32 %v1246, 4294901760
      %1248 = vmatpush2.xpose.msra.mxu0 %v1247
      %1249 = vmatprep.subr.mxu0 0.0
      %v1250 = vand.u32 %v528, 4294901760
      %v1251 = vsub.f32 %v528, %v1250
      %v1252 = vand.u32 %v1251, 4294901760
      %1253 = vmatpush2.xpose.msra.mxu0 %v1252
      %1254 = vmatprep.subr.mxu0 0.0
      %v1255 = vand.u32 %v525, 4294901760
      %v1256 = vsub.f32 %v525, %v1255
      %v1257 = vand.u32 %v1256, 4294901760
      %1258 = vmatpush2.xpose.msra.mxu0 %v1257
      %1259 = vmatprep.subr.mxu0 0.0
      %v1260 = vand.u32 %v522, 4294901760
      %v1261 = vsub.f32 %v522, %v1260
      %v1262 = vand.u32 %v1261, 4294901760
      %1263 = vmatpush2.xpose.msra.mxu0 %v1262
      %1264 = vmatprep.subr.mxu0 0.0
      %v1265 = vand.u32 %v519, 4294901760
      %v1266 = vsub.f32 %v519, %v1265
      %v1267 = vand.u32 %v1266, 4294901760
      %1268 = vmatpush2.xpose.msra.mxu0 %v1267
      %1269 = vmatprep.subr.mxu0 0.0
      %v1270 = vand.u32 %v516, 4294901760
      %v1271 = vsub.f32 %v516, %v1270
      %v1272 = vand.u32 %v1271, 4294901760
      %1273 = vmatpush2.xpose.msra.mxu0 %v1272
      %1274 = vmatprep.subr.mxu0 0.0
      %v1275 = vand.u32 %v513, 4294901760
      %v1276 = vsub.f32 %v513, %v1275
      %v1277 = vand.u32 %v1276, 4294901760
      %1278 = vmatpush2.xpose.msra.mxu0 %v1277
      %1279 = vmatprep.subr.mxu0 0.0
      %v1280 = vand.u32 %v510, 4294901760
      %v1281 = vsub.f32 %v510, %v1280
      %v1282 = vand.u32 %v1281, 4294901760
      %1283 = vmatpush2.xpose.msra.mxu0 %v1282
      %1284 = vmatprep.subr.mxu0 0.0
      %v1285 = vand.u32 %v507, 4294901760
      %v1286 = vsub.f32 %v507, %v1285
      %v1287 = vand.u32 %v1286, 4294901760
      %1288 = vmatpush2.xpose.msra.mxu0 %v1287
      %1289 = vmatprep.subr.mxu0 0.0
      %v1290 = vand.u32 %v504, 4294901760
      %v1291 = vsub.f32 %v504, %v1290
      %v1292 = vand.u32 %v1291, 4294901760
      %1293 = vmatpush2.xpose.msra.mxu0 %v1292
      %1294 = vmatprep.mubr.f32.mxu0 0.0
      %v1295 = vand.u32 %v453, 4294901760
      %1296 = vmatmul.mubr.f32.gmra.mxu0 %v1295
      %v1297 = vpop.f32.mrf.mxu0
      %v1298 = vadd.f32 %v1130, %v1297
      %v1299 = vpop.f32.mrf.mxu0
      %v1300 = vadd.f32 %v1132, %v1299
      %1301 = vdwg.mxu0
      %1302 = vmatprep.subr.mxu0 0.0
      %v1303 = vand.u32 %v501, 4294901760
      %1304 = vmatpush1.xpose.msra.mxu0 %v1303
      %1305 = vmatprep.subr.mxu0 0.0
      %v1306 = vand.u32 %v498, 4294901760
      %1307 = vmatpush1.xpose.msra.mxu0 %v1306
      %1308 = vmatprep.subr.mxu0 0.0
      %v1309 = vand.u32 %v495, 4294901760
      %1310 = vmatpush1.xpose.msra.mxu0 %v1309
      %1311 = vmatprep.subr.mxu0 0.0
      %v1312 = vand.u32 %v492, 4294901760
      %1313 = vmatpush1.xpose.msra.mxu0 %v1312
      %1314 = vmatprep.subr.mxu0 0.0
      %v1315 = vand.u32 %v489, 4294901760
      %1316 = vmatpush1.xpose.msra.mxu0 %v1315
      %1317 = vmatprep.subr.mxu0 0.0
      %v1318 = vand.u32 %v486, 4294901760
      %1319 = vmatpush1.xpose.msra.mxu0 %v1318
      %1320 = vmatprep.subr.mxu0 0.0
      %v1321 = vand.u32 %v483, 4294901760
      %1322 = vmatpush1.xpose.msra.mxu0 %v1321
      %1323 = vmatprep.subr.mxu0 0.0
      %v1324 = vand.u32 %v480, 4294901760
      %1325 = vmatpush1.xpose.msra.mxu0 %v1324
      %1326 = vmatprep.subr.mxu0 0.0
      %v1327 = vand.u32 %v477, 4294901760
      %1328 = vmatpush1.xpose.msra.mxu0 %v1327
      %1329 = vmatprep.subr.mxu0 0.0
      %v1330 = vand.u32 %v474, 4294901760
      %1331 = vmatpush1.xpose.msra.mxu0 %v1330
      %1332 = vmatprep.subr.mxu0 0.0
      %v1333 = vand.u32 %v471, 4294901760
      %1334 = vmatpush1.xpose.msra.mxu0 %v1333
      %1335 = vmatprep.subr.mxu0 0.0
      %v1336 = vand.u32 %v468, 4294901760
      %1337 = vmatpush1.xpose.msra.mxu0 %v1336
      %1338 = vmatprep.subr.mxu0 0.0
      %v1339 = vand.u32 %v465, 4294901760
      %1340 = vmatpush1.xpose.msra.mxu0 %v1339
      %1341 = vmatprep.subr.mxu0 0.0
      %v1342 = vand.u32 %v462, 4294901760
      %1343 = vmatpush1.xpose.msra.mxu0 %v1342
      %1344 = vmatprep.subr.mxu0 0.0
      %v1345 = vand.u32 %v459, 4294901760
      %1346 = vmatpush1.xpose.msra.mxu0 %v1345
      %1347 = vmatprep.subr.mxu0 0.0
      %v1348 = vand.u32 %v456, 4294901760
      %1349 = vmatpush1.xpose.msra.mxu0 %v1348
      %1350 = vmatprep.subr.mxu0 0.0
      %v1351 = vand.u32 %v549, 4294901760
      %1352 = vmatpush2.xpose.msra.mxu0 %v1351
      %1353 = vmatprep.subr.mxu0 0.0
      %v1354 = vand.u32 %v546, 4294901760
      %1355 = vmatpush2.xpose.msra.mxu0 %v1354
      %1356 = vmatprep.subr.mxu0 0.0
      %v1357 = vand.u32 %v543, 4294901760
      %1358 = vmatpush2.xpose.msra.mxu0 %v1357
      %1359 = vmatprep.subr.mxu0 0.0
      %v1360 = vand.u32 %v540, 4294901760
      %1361 = vmatpush2.xpose.msra.mxu0 %v1360
      %1362 = vmatprep.subr.mxu0 0.0
      %v1363 = vand.u32 %v537, 4294901760
      %1364 = vmatpush2.xpose.msra.mxu0 %v1363
      %1365 = vmatprep.subr.mxu0 0.0
      %v1366 = vand.u32 %v534, 4294901760
      %1367 = vmatpush2.xpose.msra.mxu0 %v1366
      %1368 = vmatprep.subr.mxu0 0.0
      %v1369 = vand.u32 %v531, 4294901760
      %1370 = vmatpush2.xpose.msra.mxu0 %v1369
      %1371 = vmatprep.subr.mxu0 0.0
      %v1372 = vand.u32 %v528, 4294901760
      %1373 = vmatpush2.xpose.msra.mxu0 %v1372
      %1374 = vmatprep.subr.mxu0 0.0
      %v1375 = vand.u32 %v525, 4294901760
      %1376 = vmatpush2.xpose.msra.mxu0 %v1375
      %1377 = vmatprep.subr.mxu0 0.0
      %v1378 = vand.u32 %v522, 4294901760
      %1379 = vmatpush2.xpose.msra.mxu0 %v1378
      %1380 = vmatprep.subr.mxu0 0.0
      %v1381 = vand.u32 %v519, 4294901760
      %1382 = vmatpush2.xpose.msra.mxu0 %v1381
      %1383 = vmatprep.subr.mxu0 0.0
      %v1384 = vand.u32 %v516, 4294901760
      %1385 = vmatpush2.xpose.msra.mxu0 %v1384
      %1386 = vmatprep.subr.mxu0 0.0
      %v1387 = vand.u32 %v513, 4294901760
      %1388 = vmatpush2.xpose.msra.mxu0 %v1387
      %1389 = vmatprep.subr.mxu0 0.0
      %v1390 = vand.u32 %v510, 4294901760
      %1391 = vmatpush2.xpose.msra.mxu0 %v1390
      %1392 = vmatprep.subr.mxu0 0.0
      %v1393 = vand.u32 %v507, 4294901760
      %1394 = vmatpush2.xpose.msra.mxu0 %v1393
      %1395 = vmatprep.subr.mxu0 0.0
      %v1396 = vand.u32 %v504, 4294901760
      %1397 = vmatpush2.xpose.msra.mxu0 %v1396
      %1398 = vmatprep.mubr.f32.mxu0 0.0
      %v1399 = vand.u32 %v453, 4294901760
      %1400 = vmatmul.mubr.f32.gmra.mxu0 %v1399
      %v1401 = vpop.f32.mrf.mxu0
      %v1402 = vadd.f32 %v1298, %v1401
      %v1403 = vpop.f32.mrf.mxu0
      %v1404 = vadd.f32 %v1300, %v1403
      %1405 = vdwg.mxu0
      %v1406 = vld [vmem:[%s277] sm:$0x3]
      %v1407 = vrsqrt.pop %v1402
      %v1408 = vmul.f32 %v1402, %v1407
      %vm1409 = vcmp.eq.f32.partialorder %v1402, inf
      %v1410 = vsel %vm1409, %v1402, %v1408
      %vm1411 = vcmp.eq.f32.partialorder %v1402, 0.0
      %v1412 = vand.u32 %v1402, 2147483648
      %v1413 = vsel %vm1411, %v1412, %v1410
      %v1414 = vrsqrt.pop %v1404
      %v1415 = vmul.f32 %v1404, %v1414
      %vm1416 = vcmp.eq.f32.partialorder %v1404, inf
      %v1417 = vsel %vm1416, %v1404, %v1415
      %vm1418 = vcmp.eq.f32.partialorder %v1404, 0.0
      %v1419 = vand.u32 %v1404, 2147483648
      %v1420 = vsel %vm1418, %v1419, %v1417
      %v1421 = vsub.f32 2.0, %v1413
      %v1422 = vsub.f32 2.0, %v1420
      %v1423 = vmax.f32 %v1421, 0.0
      %v1424 = vmax.f32 %v1422, 0.0
      %v1425 = vsub.f32 1.0, %v1406
      %v1428 = vcombine.low %v1402, %v1404
      %v1430 = vunpack.c.l.s4 1966171168
      %v1431 = vunpack.c.0.s8 %v1430
      %v1432 = vlaneseq
      %v1433 = vshrl.u32 %v1432, 7
      %v1434 = vsub.s32 %v1431, %v1433
      %v1435 = vrot.slane %v1428, %v1434
      %v1437 = vunpack.c.l.s4 1966171168
      %v1438 = vunpack.c.0.s8 %v1437
      %v1439 = vlaneseq
      %v1440 = vshrl.u32 %v1439, 7
      %v1441 = vsub.s32 %v1438, %v1440
      %v1442 = vrot.slane %v1435, %v1441
      %v1444 = vmul.f32 %v1425, %v1442
      %v1445 = vmul.f32 %v1423, %v1423
      %v1446 = vmul.f32 %v1424, %v1424
      %v1449 = vcombine.low %v1445, %v1446
      %v1451 = vunpack.c.l.s4 1966171168
      %v1452 = vunpack.c.0.s8 %v1451
      %v1453 = vlaneseq
      %v1454 = vshrl.u32 %v1453, 7
      %v1455 = vsub.s32 %v1452, %v1454
      %v1456 = vrot.slane %v1449, %v1455
      %v1458 = vunpack.c.l.s4 1966171168
      %v1459 = vunpack.c.0.s8 %v1458
      %v1460 = vlaneseq
      %v1461 = vshrl.u32 %v1460, 7
      %v1462 = vsub.s32 %v1459, %v1461
      %v1463 = vrot.slane %v1456, %v1462
      %v1465 = vmul.f32 %v1406, %v1463
      %v1466 = vadd.f32 %v1444, %v1465
      %s1467 = sadd.s32 %s18, %s19
      %s1468 = smul.u32 %s1467, 256
      %v1469 = vlaneseq
      %v1470 = vand.u32 %v1469, 127
      %v1471 = vadd.s32 %v1470, 128
      %v1472 = vstv %s1468
      %v1473 = vadd.s32 %v1472, %v1470
      %v1474 = vadd.s32 %v1472, %v1471
      %vm1475 = vcmp.lt.s32.totalorder %v1473, 250
      %vm1476 = vcmp.lt.s32.totalorder %v1474, 250
      %v1478 = vlaneseq
      %v1479 = vshrl.u32 %v1478, 7
      %v1480 = vsub.s32 0, %v1479
      %v1481 = vrot.slane %v1466, %v1480
      %v1482 = vlaneseq
      %v1483 = vshrl.u32 %v1482, 7
      %v1484 = vsub.s32 1, %v1483
      %v1485 = vrot.slane %v1466, %v1484
      %v1488 = vsel %vm1475, %v1481, 0.0
      %v1489 = vsel %vm1476, %v1485, 0.0
      %vm1490 = vcmask 1040384
      %v1491 = vsel %vm1490, %v1488, 0.0
      %v1492 = vsel %vm1490, %v1489, 0.0
      %v1493 = vadd.f32 %v1491, %v1492
      %1494 = vadd.xlane.f32.xlu0 %v1493
      %v1495 = vpop.xlane.xlu0 %1494
      %v1496 = vld [vmem:[%s284] sm:$0x1]
      %v1497 = vadd.f32 %v1496, %v1495
      %vm1498 = vcmask 0
      %1499 = vst.msk [vmem:[%s284] sm:$0x1] %vm1498, %v1497
      %p1500 = scmp.lt.s32.totalorder %s18, 1
      %s1501 = scalar_select %p1500, %s18, 1
      %s1502 = scalar_lea.vmem %s3, %s1501
      // Predicated region
      $region37: #{tpu_custom_call.1} parent=31 // pred_check
        %p1503 = pneg %p140
      $region38: #{tpu_custom_call.1} parent=31 // pred_check_branch
        %1505 = sbr.rel (%p1503) target = $region40
      $region39: #{tpu_custom_call.1} parent=31 // pred_region
        _
      $region40: #{tpu_custom_call.1} parent=31 // pred_fallthru
        _
    $region32: #{tpu_custom_call.1} parent=5 // pred_fallthru
      _
    %p1506 = scmp.le.s32.totalorder 2, %s9
    // Predicated region
    $region41: #{tpu_custom_call.1} parent=5 // pred_check
      %p1507 = pneg %p1506
    $region42: #{tpu_custom_call.1} parent=5 // pred_check_branch
      %1509 = sbr.rel (%p1507) target = $region44
    $region43: #{tpu_custom_call.1} parent=5 // pred_region
      %s1510 = ssub.s32 %s9, 2
      // Predicated region
      $region45: #{tpu_custom_call.1} parent=43 // pred_check
        %p1511 = pneg %p146
      $region46: #{tpu_custom_call.1} parent=43 // pred_check_branch
        %1513 = sbr.rel (%p1511) target = $region48
      $region47: #{tpu_custom_call.1} parent=43 // pred_region
        %p1514 = scmp.lt.s32.totalorder %s20, 1
        %s1515 = scalar_select %p1514, %s20, 1
        %s1516 = scalar_lea.vmem %s3, %s1515
      $region48: #{tpu_custom_call.1} parent=43 // pred_fallthru
        _
    $region44: #{tpu_custom_call.1} parent=5 // pred_fallthru
      _
  $region6: #{tpu_custom_call.1} parent=0 // loop_footer
    %s13 = sadd.s32 1, %s9
  $region7: #{tpu_custom_call.1} parent=0 // loop_footer_branch
    %8 = sbr.rel target = $region3
  $region8: #{tpu_custom_call.1} parent=0 // loop_exit
    _

</llo_original>
